<compile_context>
chip_gen: v7x
topology: tpu7x:2x2x1
jax: 0.10.0
libtpu: 0.0.40
codegen_flags: <defaults>
</compile_context>

<pallas_src>
import functools

import numpy as np
import jax
import jax.numpy as jnp
from jax import lax
from jax.experimental import pallas as pl
from jax.experimental.pallas import tpu as pltpu

# ----------------------------- model config ---------------------------------
IMG = 32          # image spatial size
PATCH = 16        # patch size (conv kernel = stride = PATCH, no bias)
CHANNELS = 3
GRID = IMG // PATCH
NUM_PATCHES = GRID * GRID          # 4
SEQ = NUM_PATCHES + 1              # + CLS token = 5 real tokens per image
SEQ_PAD = 8                        # padded to one f32 sublane tile
HIDDEN = 64
HEADS = 2
HEAD_DIM = HIDDEN // HEADS         # 32
INTERMEDIATE = 128
LAYERS = 2
PROJ_DIM = 32
LN_EPS = 1e-5
MASK_VAL = -1e9                    # bf16-safe additive mask (added on f32 path)

# MXU operand dtype (accumulation always f32 via preferred_element_type).
# bf16 is MXU-native on v5e/v6e/v7x; set jnp.float32 for exact f32 parity.
MXU_DTYPE = jnp.bfloat16


# ----------------------------- fused Pallas kernel ---------------------------
def _clip_vision_kernel(
    # embedding inputs
    patches_ref, patch_w_ref, cls_ref, pos_ref, pre_g_ref, pre_b_ref,
    bias_ref,
    # stacked per-layer weights (leading LAYERS axis, indexed statically)
    ln1_g_ref, ln1_b_ref, qkv_w_ref, qkv_b_ref, o_w_ref, o_b_ref,
    ln2_g_ref, ln2_b_ref, fc1_w_ref, fc1_b_ref, fc2_w_ref, fc2_b_ref,
    # head inputs
    post_g_ref, post_b_ref, proj_w_ref,
    # output
    out_ref,
    *, batch):

  def mm(a, b):
    return jnp.dot(a.astype(MXU_DTYPE), b.astype(MXU_DTYPE),
                   preferred_element_type=jnp.float32)

  def ln(x, g, b):
    mu = jnp.mean(x, axis=-1, keepdims=True)
    var = jnp.mean(jnp.square(x - mu), axis=-1, keepdims=True)
    return (x - mu) * lax.rsqrt(var + LN_EPS) * g + b

  # ---------------- embeddings + pre-LN (built in registers, stored once) ----
  patch_emb = mm(patches_ref[...], patch_w_ref[...])           # [B*NP, H] f32
  cls_row = cls_ref[...] + pos_ref[0:1, :]                     # [1, H]
  pos_patch = pos_ref[1:SEQ, :]                                # [NP, H]
  pad_rows = jnp.zeros((SEQ_PAD - SEQ, HIDDEN), jnp.float32)   # [3, H]
  rows = []
  for b in range(batch):                                       # tiny static B
    rows.append(cls_row)
    rows.append(patch_emb[b * NUM_PATCHES:(b + 1) * NUM_PATCHES, :] + pos_patch)
    rows.append(pad_rows)
  h = jnp.concatenate(rows, axis=0)                            # [B*SEQ_PAD, H]
  h = ln(h, pre_g_ref[...], pre_b_ref[...])                    # pre layernorm

  attn_bias = bias_ref[...]                                    # [n_tok, n_tok] f32

  # ---------------- transformer layers (static unroll) -----------------------
  for l in range(LAYERS):
    res1 = h
    hn = ln(res1, ln1_g_ref[l], ln1_b_ref[l])
    qkv = mm(hn, qkv_w_ref[l]) + qkv_b_ref[l]                  # [B*SP, 3H]
    q = qkv[:, 0:HIDDEN]                  # scale pre-folded into packed weights
    k = qkv[:, HIDDEN:2 * HIDDEN]
    v = qkv[:, 2 * HIDDEN:3 * HIDDEN]

    heads = []
    for hd in range(HEADS):                                    # static unroll
      c0 = hd * HEAD_DIM
      qh = q[:, c0:c0 + HEAD_DIM]
      kh = k[:, c0:c0 + HEAD_DIM]
      vh = v[:, c0:c0 + HEAD_DIM]
      s = lax.dot_general(qh.astype(MXU_DTYPE), kh.astype(MXU_DTYPE),
                          (((1,), (1,)), ((), ())),
                          preferred_element_type=jnp.float32) + attn_bias
      s = s - jnp.max(s, axis=-1, keepdims=True)
      p = jnp.exp(s)
      p = p / jnp.sum(p, axis=-1, keepdims=True)               # exact divide
      heads.append(mm(p, vh))                                  # [B*SP, HEAD_DIM]
    attn_out = jnp.concatenate(heads, axis=1)                  # stays in vregs

    h1 = res1 + mm(attn_out, o_w_ref[l]) + o_b_ref[l]          # residual add
    hn2 = ln(h1, ln2_g_ref[l], ln2_b_ref[l])
    m = mm(hn2, fc1_w_ref[l]) + fc1_b_ref[l]
    m = m * jax.nn.sigmoid(1.702 * m)                          # quick_gelu
    h = h1 + mm(m, fc2_w_ref[l]) + fc2_b_ref[l]                # residual add

  # --------- pooled CLS -> post-LN -> visual projection -----------------------
  # CLS rows sit at tile-aligned rows b*SEQ_PAD -> static slice pooling.
  pooled = jnp.concatenate(
      [h[b * SEQ_PAD:b * SEQ_PAD + 1, :] for b in range(batch)], axis=0)
  pooled = ln(pooled, post_g_ref[...], post_b_ref[...])
  out_ref[...] = mm(pooled, proj_w_ref[...]).astype(out_ref.dtype)


# ----------------------------- parameters ------------------------------------
def init_params(key):
  """Weights in PyTorch nn.Linear / nn.Conv2d layout (stand-in for checkpoint)."""
  keys = iter(jax.random.split(key, 16 + 16 * LAYERS))

  def nrm(shape, scale=0.02):
    return (scale * jax.random.normal(next(keys), shape)).astype(jnp.float32)

  params = {
      "patch_w": nrm((HIDDEN, CHANNELS * PATCH * PATCH)),  # Conv2d flattened
      "class_emb": nrm((HIDDEN,)),
      "pos_emb": nrm((SEQ, HIDDEN)),
      "pre_ln_g": jnp.ones((HIDDEN,), jnp.float32),
      "pre_ln_b": jnp.zeros((HIDDEN,), jnp.float32),
      "post_ln_g": jnp.ones((HIDDEN,), jnp.float32),
      "post_ln_b": jnp.zeros((HIDDEN,), jnp.float32),
      "vis_proj_w": nrm((PROJ_DIM, HIDDEN)),               # Linear, no bias
      "layers": [],
  }
  for _ in range(LAYERS):
    params["layers"].append({
        "ln1_g": jnp.ones((HIDDEN,), jnp.float32),
        "ln1_b": jnp.zeros((HIDDEN,), jnp.float32),
        "q_w": nrm((HIDDEN, HIDDEN)), "q_b": jnp.zeros((HIDDEN,), jnp.float32),
        "k_w": nrm((HIDDEN, HIDDEN)), "k_b": jnp.zeros((HIDDEN,), jnp.float32),
        "v_w": nrm((HIDDEN, HIDDEN)), "v_b": jnp.zeros((HIDDEN,), jnp.float32),
        "o_w": nrm((HIDDEN, HIDDEN)), "o_b": jnp.zeros((HIDDEN,), jnp.float32),
        "ln2_g": jnp.ones((HIDDEN,), jnp.float32),
        "ln2_b": jnp.zeros((HIDDEN,), jnp.float32),
        "fc1_w": nrm((INTERMEDIATE, HIDDEN)),
        "fc1_b": jnp.zeros((INTERMEDIATE,), jnp.float32),
        "fc2_w": nrm((HIDDEN, INTERMEDIATE)),
        "fc2_b": jnp.zeros((HIDDEN,), jnp.float32),
    })
  return params


def pack_params(p):
  """One-time layout packing (outside the jitted forward): transpose weights
  to [K, N], stack per-layer tensors along a LAYERS axis, fuse Q/K/V into one
  [H, 3H] weight with the attention scale folded into Q, cast matmul weights
  to the MXU operand dtype, reshape biases/LN params to [1, N]."""
  L = p["layers"]
  scale = float(HEAD_DIM) ** -0.5

  def wt(a):          # matmul weights in MXU dtype (bf16) once, host-side
    return a.astype(MXU_DTYPE)

  def stk(fn):
    return jnp.stack([fn(lp) for lp in L])

  return {
      "patch_w_t": wt(p["patch_w"].T),                                # [CPP, H]
      "class_emb": p["class_emb"].reshape(1, HIDDEN),
      "pos_emb": p["pos_emb"],                                        # [SEQ, H]
      "pre_ln_g": p["pre_ln_g"].reshape(1, HIDDEN),
      "pre_ln_b": p["pre_ln_b"].reshape(1, HIDDEN),
      "ln1_g": stk(lambda lp: lp["ln1_g"].reshape(1, HIDDEN)),        # [L,1,H]
      "ln1_b": stk(lambda lp: lp["ln1_b"].reshape(1, HIDDEN)),
      "qkv_w": stk(lambda lp: wt(jnp.concatenate(
          [lp["q_w"].T * scale, lp["k_w"].T, lp["v_w"].T], axis=1))), # [L,H,3H]
      "qkv_b": stk(lambda lp: jnp.concatenate(
          [lp["q_b"] * scale, lp["k_b"], lp["v_b"]]).reshape(1, 3 * HIDDEN)),
      "o_w": stk(lambda lp: wt(lp["o_w"].T)),                         # [L,H,H]
      "o_b": stk(lambda lp: lp["o_b"].reshape(1, HIDDEN)),
      "ln2_g": stk(lambda lp: lp["ln2_g"].reshape(1, HIDDEN)),
      "ln2_b": stk(lambda lp: lp["ln2_b"].reshape(1, HIDDEN)),
      "fc1_w": stk(lambda lp: wt(lp["fc1_w"].T)),                     # [L,H,I]
      "fc1_b": stk(lambda lp: lp["fc1_b"].reshape(1, INTERMEDIATE)),
      "fc2_w": stk(lambda lp: wt(lp["fc2_w"].T)),                     # [L,I,H]
      "fc2_b": stk(lambda lp: lp["fc2_b"].reshape(1, HIDDEN)),
      "post_ln_g": p["post_ln_g"].reshape(1, HIDDEN),
      "post_ln_b": p["post_ln_b"].reshape(1, HIDDEN),
      "vis_proj_t": wt(p["vis_proj_w"].T),                            # [H, PROJ]
  }


# ----------------------------- forward ---------------------------------------
def extract_patches(x):
  """NCHW [B, C, IMG, IMG] -> [B*NUM_PATCHES, C*PATCH*PATCH] in (C, kh, kw)
  order, matching the flattened PyTorch conv weight [HIDDEN, C, P, P]."""
  B = x.shape[0]
  x = x.reshape(B, CHANNELS, GRID, PATCH, GRID, PATCH)
  x = x.transpose(0, 2, 4, 1, 3, 5)            # [B, Gh, Gw, C, P, P]
  return x.reshape(B * NUM_PATCHES, CHANNELS * PATCH * PATCH)


def build_attn_bias(batch):
  """Batch-static block-diagonal additive bias (built once on host, numpy):
  queries attend only to the SEQ real tokens of their own image; the SEQ_PAD
  padding columns are always masked. bf16-safe value; added on the f32 path."""
  n = batch * SEQ_PAD
  bias = np.full((n, n), MASK_VAL, dtype=np.float32)
  for b in range(batch):
    lo = b * SEQ_PAD
    bias[lo:lo + SEQ_PAD, lo:lo + SEQ] = 0.0
  return jnp.asarray(bias)


def image_prompter_forward(pixel_values, pp):
  """Equivalent of CLIPModel.get_image_features(pixel_values) -> [B, PROJ_DIM]."""
  B = pixel_values.shape[0]
  patches = extract_patches(pixel_values)      # pure layout plumbing (one XLA op)
  attn_bias = build_attn_bias(B)               # trace-time constant

  args = (patches, pp["patch_w_t"], pp["class_emb"], pp["pos_emb"],
          pp["pre_ln_g"], pp["pre_ln_b"], attn_bias,
          pp["ln1_g"], pp["ln1_b"], pp["qkv_w"], pp["qkv_b"],
          pp["o_w"], pp["o_b"], pp["ln2_g"], pp["ln2_b"],
          pp["fc1_w"], pp["fc1_b"], pp["fc2_w"], pp["fc2_b"],
          pp["post_ln_g"], pp["post_ln_b"], pp["vis_proj_t"])

  def full(arr):
    nd = arr.ndim
    return pl.BlockSpec(arr.shape, lambda l, nd=nd: (0,) * nd)

  # Single invocation: all weights + activations (<1 MiB) stay resident in
  # VMEM for the whole forward; no per-layer grid/pipeline overhead.
  return pl.pallas_call(
      functools.partial(_clip_vision_kernel, batch=B),
      out_shape=jax.ShapeDtypeStruct((B, PROJ_DIM), jnp.float32),
      grid=(1,),
      in_specs=[full(a) for a in args],
      out_specs=pl.BlockSpec((B, PROJ_DIM), lambda l: (0, 0)),
      compiler_params=pltpu.CompilerParams(
          dimension_semantics=("arbitrary",)),
  )(*args)


# ----------------------------- main -------------------------------------------
if __name__ == "__main__":
  key = jax.random.PRNGKey(0)
  k_img, k_param = jax.random.split(key)

  # "preprocessed" pixel_values, NCHW like the CLIPProcessor output
  pixel_values = jax.random.normal(k_img, (2, CHANNELS, IMG, IMG), dtype=jnp.float32)
  packed = pack_params(init_params(k_param))    # one-time weight packing

  fwd = jax.jit(image_prompter_forward)
  feats = fwd(pixel_values, packed)
  jax.block_until_ready(feats)

  assert feats.shape == (2, PROJ_DIM) and feats.dtype == jnp.float32
  assert bool(jnp.all(jnp.isfinite(feats)))
  print("KERNEL_OK")
</pallas_src>

<mosaic_0001>
module attributes {stable_mosaic.version = 11 : i64} {
  func.func @_clip_vision_kernel(%arg0: i32, %arg1: memref<8x768xf32, #tpu.memory_space<vmem>>, %arg2: memref<768x64xbf16, #tpu.memory_space<vmem>>, %arg3: memref<1x64xf32, #tpu.memory_space<vmem>>, %arg4: memref<5x64xf32, #tpu.memory_space<vmem>>, %arg5: memref<1x64xf32, #tpu.memory_space<vmem>>, %arg6: memref<1x64xf32, #tpu.memory_space<vmem>>, %arg7: memref<16x16xf32, #tpu.memory_space<vmem>>, %arg8: memref<2x1x64xf32, #tpu.memory_space<vmem>>, %arg9: memref<2x1x64xf32, #tpu.memory_space<vmem>>, %arg10: memref<2x64x192xbf16, #tpu.memory_space<vmem>>, %arg11: memref<2x1x192xf32, #tpu.memory_space<vmem>>, %arg12: memref<2x64x64xbf16, #tpu.memory_space<vmem>>, %arg13: memref<2x1x64xf32, #tpu.memory_space<vmem>>, %arg14: memref<2x1x64xf32, #tpu.memory_space<vmem>>, %arg15: memref<2x1x64xf32, #tpu.memory_space<vmem>>, %arg16: memref<2x64x128xbf16, #tpu.memory_space<vmem>>, %arg17: memref<2x1x128xf32, #tpu.memory_space<vmem>>, %arg18: memref<2x128x64xbf16, #tpu.memory_space<vmem>>, %arg19: memref<2x1x64xf32, #tpu.memory_space<vmem>>, %arg20: memref<1x64xf32, #tpu.memory_space<vmem>>, %arg21: memref<1x64xf32, #tpu.memory_space<vmem>>, %arg22: memref<64x32xbf16, #tpu.memory_space<vmem>>, %arg23: memref<2x32xf32, #tpu.memory_space<vmem>>) attributes {dimension_semantics = [#tpu.dimension_semantics<arbitrary>], iteration_bounds = array<i64: 1>, scalar_prefetch = 0 : i64, scratch_operands = 0 : i64, tpu.core_type = #tpu.core_type<tc>, window_params = [{pipeline_mode = #tpu.pipeline_mode<synchronous>, transform_indices = @transform_0, window_bounds = array<i64: 8, 768>}, {pipeline_mode = #tpu.pipeline_mode<synchronous>, transform_indices = @transform_1, window_bounds = array<i64: 768, 64>}, {pipeline_mode = #tpu.pipeline_mode<synchronous>, transform_indices = @transform_2, window_bounds = array<i64: 1, 64>}, {pipeline_mode = #tpu.pipeline_mode<synchronous>, transform_indices = @transform_3, window_bounds = array<i64: 5, 64>}, {pipeline_mode = #tpu.pipeline_mode<synchronous>, transform_indices = @transform_4, window_bounds = array<i64: 1, 64>}, {pipeline_mode = #tpu.pipeline_mode<synchronous>, transform_indices = @transform_5, window_bounds = array<i64: 1, 64>}, {pipeline_mode = #tpu.pipeline_mode<synchronous>, transform_indices = @transform_6, window_bounds = array<i64: 16, 16>}, {pipeline_mode = #tpu.pipeline_mode<synchronous>, transform_indices = @transform_7, window_bounds = array<i64: 2, 1, 64>}, {pipeline_mode = #tpu.pipeline_mode<synchronous>, transform_indices = @transform_8, window_bounds = array<i64: 2, 1, 64>}, {pipeline_mode = #tpu.pipeline_mode<synchronous>, transform_indices = @transform_9, window_bounds = array<i64: 2, 64, 192>}, {pipeline_mode = #tpu.pipeline_mode<synchronous>, transform_indices = @transform_10, window_bounds = array<i64: 2, 1, 192>}, {pipeline_mode = #tpu.pipeline_mode<synchronous>, transform_indices = @transform_11, window_bounds = array<i64: 2, 64, 64>}, {pipeline_mode = #tpu.pipeline_mode<synchronous>, transform_indices = @transform_12, window_bounds = array<i64: 2, 1, 64>}, {pipeline_mode = #tpu.pipeline_mode<synchronous>, transform_indices = @transform_13, window_bounds = array<i64: 2, 1, 64>}, {pipeline_mode = #tpu.pipeline_mode<synchronous>, transform_indices = @transform_14, window_bounds = array<i64: 2, 1, 64>}, {pipeline_mode = #tpu.pipeline_mode<synchronous>, transform_indices = @transform_15, window_bounds = array<i64: 2, 64, 128>}, {pipeline_mode = #tpu.pipeline_mode<synchronous>, transform_indices = @transform_16, window_bounds = array<i64: 2, 1, 128>}, {pipeline_mode = #tpu.pipeline_mode<synchronous>, transform_indices = @transform_17, window_bounds = array<i64: 2, 128, 64>}, {pipeline_mode = #tpu.pipeline_mode<synchronous>, transform_indices = @transform_18, window_bounds = array<i64: 2, 1, 64>}, {pipeline_mode = #tpu.pipeline_mode<synchronous>, transform_indices = @transform_19, window_bounds = array<i64: 1, 64>}, {pipeline_mode = #tpu.pipeline_mode<synchronous>, transform_indices = @transform_20, window_bounds = array<i64: 1, 64>}, {pipeline_mode = #tpu.pipeline_mode<synchronous>, transform_indices = @transform_21, window_bounds = array<i64: 64, 32>}, {pipeline_mode = #tpu.pipeline_mode<synchronous>, transform_indices = @transform_22, window_bounds = array<i64: 2, 32>}]} {
    %c0 = arith.constant 0 : index
    %c0_0 = arith.constant 0 : index
    %0 = vector.load %arg1[%c0, %c0_0] : memref<8x768xf32, #tpu.memory_space<vmem>>, vector<8x768xf32>
    %c0_1 = arith.constant 0 : index
    %c0_2 = arith.constant 0 : index
    %1 = vector.load %arg2[%c0_1, %c0_2] : memref<768x64xbf16, #tpu.memory_space<vmem>>, vector<768x64xbf16>
    %2 = arith.truncf %0 : vector<8x768xf32> to vector<8x768xbf16>
    %cst = arith.constant dense<0.000000e+00> : vector<8x64xf32>
    %3 = tpu.matmul %2, %1, %cst {dimension_numbers = #tpu.dot_dimension_numbers<[1], [0], [0], [1], [0, 0, 1, 1], [], []>} : vector<8x768xbf16>, vector<768x64xbf16>, vector<8x64xf32> -> vector<8x64xf32>
    %c0_3 = arith.constant 0 : index
    %c0_4 = arith.constant 0 : index
    %4 = vector.load %arg3[%c0_3, %c0_4] : memref<1x64xf32, #tpu.memory_space<vmem>>, vector<1x64xf32>
    %c0_5 = arith.constant 0 : index
    %c0_6 = arith.constant 0 : index
    %5 = vector.load %arg4[%c0_5, %c0_6] : memref<5x64xf32, #tpu.memory_space<vmem>>, vector<1x64xf32>
    %6 = arith.addf %4, %5 : vector<1x64xf32>
    %c1 = arith.constant 1 : index
    %c0_7 = arith.constant 0 : index
    %7 = vector.load %arg4[%c1, %c0_7] : memref<5x64xf32, #tpu.memory_space<vmem>>, vector<4x64xf32>
    %cst_8 = arith.constant 0.000000e+00 : f32
    %8 = vector.broadcast %cst_8 : f32 to vector<3x64xf32>
    %9 = vector.extract_strided_slice %3 {offsets = [0, 0], sizes = [4, 64], strides = [1, 1]} : vector<8x64xf32> to vector<4x64xf32>
    %10 = arith.addf %9, %7 : vector<4x64xf32>
    %11 = vector.extract_strided_slice %3 {offsets = [4, 0], sizes = [4, 64], strides = [1, 1]} : vector<8x64xf32> to vector<4x64xf32>
    %12 = arith.addf %11, %7 : vector<4x64xf32>
    %13 = tpu.concatenate %6, %10, %8, %6, %12, %8 in 0 : vector<1x64xf32>, vector<4x64xf32>, vector<3x64xf32>, vector<1x64xf32>, vector<4x64xf32>, vector<3x64xf32> -> vector<16x64xf32>
    %c0_9 = arith.constant 0 : index
    %c0_10 = arith.constant 0 : index
    %14 = vector.load %arg5[%c0_9, %c0_10] : memref<1x64xf32, #tpu.memory_space<vmem>>, vector<1x64xf32>
    %c0_11 = arith.constant 0 : index
    %c0_12 = arith.constant 0 : index
    %15 = vector.load %arg6[%c0_11, %c0_12] : memref<1x64xf32, #tpu.memory_space<vmem>>, vector<1x64xf32>
    %cst_13 = arith.constant dense<0.000000e+00> : vector<16xf32>
    %16 = vector.multi_reduction <add>, %13, %cst_13 [1] : vector<16x64xf32> to vector<16xf32>
    %17 = vector.shape_cast %16 : vector<16xf32> to vector<16x1xf32>
    %cst_14 = arith.constant 6.400000e+01 : f32
    %18 = vector.broadcast %cst_14 : f32 to vector<16x1xf32>
    %19 = arith.divf %17, %18 : vector<16x1xf32>
    %20 = vector.broadcast %19 : vector<16x1xf32> to vector<16x64xf32>
    %21 = arith.subf %13, %20 : vector<16x64xf32>
    %22 = arith.mulf %21, %21 : vector<16x64xf32>
    %cst_15 = arith.constant dense<0.000000e+00> : vector<16xf32>
    %23 = vector.multi_reduction <add>, %22, %cst_15 [1] : vector<16x64xf32> to vector<16xf32>
    %24 = vector.shape_cast %23 : vector<16xf32> to vector<16x1xf32>
    %cst_16 = arith.constant 6.400000e+01 : f32
    %25 = vector.broadcast %cst_16 : f32 to vector<16x1xf32>
    %26 = arith.divf %24, %25 : vector<16x1xf32>
    %27 = vector.broadcast %19 : vector<16x1xf32> to vector<16x64xf32>
    %28 = arith.subf %13, %27 : vector<16x64xf32>
    %cst_17 = arith.constant 9.99999974E-6 : f32
    %29 = vector.broadcast %cst_17 : f32 to vector<16x1xf32>
    %30 = arith.addf %26, %29 : vector<16x1xf32>
    %31 = math.rsqrt %30 : vector<16x1xf32>
    %32 = vector.broadcast %31 : vector<16x1xf32> to vector<16x64xf32>
    %33 = arith.mulf %28, %32 : vector<16x64xf32>
    %34 = vector.broadcast %14 : vector<1x64xf32> to vector<16x64xf32>
    %35 = arith.mulf %33, %34 : vector<16x64xf32>
    %36 = vector.broadcast %15 : vector<1x64xf32> to vector<16x64xf32>
    %37 = arith.addf %35, %36 : vector<16x64xf32>
    %c0_18 = arith.constant 0 : index
    %c0_19 = arith.constant 0 : index
    %38 = vector.load %arg7[%c0_18, %c0_19] : memref<16x16xf32, #tpu.memory_space<vmem>>, vector<16x16xf32>
    %c0_20 = arith.constant 0 : index
    %c0_21 = arith.constant 0 : index
    %c0_22 = arith.constant 0 : index
    %39 = vector.load %arg8[%c0_20, %c0_21, %c0_22] : memref<2x1x64xf32, #tpu.memory_space<vmem>>, vector<1x1x64xf32>
    %40 = vector.shape_cast %39 : vector<1x1x64xf32> to vector<1x64xf32>
    %c0_23 = arith.constant 0 : index
    %c0_24 = arith.constant 0 : index
    %c0_25 = arith.constant 0 : index
    %41 = vector.load %arg9[%c0_23, %c0_24, %c0_25] : memref<2x1x64xf32, #tpu.memory_space<vmem>>, vector<1x1x64xf32>
    %42 = vector.shape_cast %41 : vector<1x1x64xf32> to vector<1x64xf32>
    %cst_26 = arith.constant dense<0.000000e+00> : vector<16xf32>
    %43 = vector.multi_reduction <add>, %37, %cst_26 [1] : vector<16x64xf32> to vector<16xf32>
    %44 = vector.shape_cast %43 : vector<16xf32> to vector<16x1xf32>
    %cst_27 = arith.constant 6.400000e+01 : f32
    %45 = vector.broadcast %cst_27 : f32 to vector<16x1xf32>
    %46 = arith.divf %44, %45 : vector<16x1xf32>
    %47 = vector.broadcast %46 : vector<16x1xf32> to vector<16x64xf32>
    %48 = arith.subf %37, %47 : vector<16x64xf32>
    %49 = arith.mulf %48, %48 : vector<16x64xf32>
    %cst_28 = arith.constant dense<0.000000e+00> : vector<16xf32>
    %50 = vector.multi_reduction <add>, %49, %cst_28 [1] : vector<16x64xf32> to vector<16xf32>
    %51 = vector.shape_cast %50 : vector<16xf32> to vector<16x1xf32>
    %cst_29 = arith.constant 6.400000e+01 : f32
    %52 = vector.broadcast %cst_29 : f32 to vector<16x1xf32>
    %53 = arith.divf %51, %52 : vector<16x1xf32>
    %54 = vector.broadcast %46 : vector<16x1xf32> to vector<16x64xf32>
    %55 = arith.subf %37, %54 : vector<16x64xf32>
    %cst_30 = arith.constant 9.99999974E-6 : f32
    %56 = vector.broadcast %cst_30 : f32 to vector<16x1xf32>
    %57 = arith.addf %53, %56 : vector<16x1xf32>
    %58 = math.rsqrt %57 : vector<16x1xf32>
    %59 = vector.broadcast %58 : vector<16x1xf32> to vector<16x64xf32>
    %60 = arith.mulf %55, %59 : vector<16x64xf32>
    %61 = vector.broadcast %40 : vector<1x64xf32> to vector<16x64xf32>
    %62 = arith.mulf %60, %61 : vector<16x64xf32>
    %63 = vector.broadcast %42 : vector<1x64xf32> to vector<16x64xf32>
    %64 = arith.addf %62, %63 : vector<16x64xf32>
    %c0_31 = arith.constant 0 : index
    %c0_32 = arith.constant 0 : index
    %c0_33 = arith.constant 0 : index
    %65 = vector.load %arg10[%c0_31, %c0_32, %c0_33] : memref<2x64x192xbf16, #tpu.memory_space<vmem>>, vector<1x64x192xbf16>
    %66 = vector.shape_cast %65 : vector<1x64x192xbf16> to vector<64x192xbf16>
    %67 = arith.truncf %64 : vector<16x64xf32> to vector<16x64xbf16>
    %cst_34 = arith.constant dense<0.000000e+00> : vector<16x192xf32>
    %68 = tpu.matmul %67, %66, %cst_34 {dimension_numbers = #tpu.dot_dimension_numbers<[1], [0], [0], [1], [0, 0, 1, 1], [], []>} : vector<16x64xbf16>, vector<64x192xbf16>, vector<16x192xf32> -> vector<16x192xf32>
    %c0_35 = arith.constant 0 : index
    %c0_36 = arith.constant 0 : index
    %c0_37 = arith.constant 0 : index
    %69 = vector.load %arg11[%c0_35, %c0_36, %c0_37] : memref<2x1x192xf32, #tpu.memory_space<vmem>>, vector<1x1x192xf32>
    %70 = vector.shape_cast %69 : vector<1x1x192xf32> to vector<1x192xf32>
    %71 = vector.broadcast %70 : vector<1x192xf32> to vector<16x192xf32>
    %72 = arith.addf %68, %71 : vector<16x192xf32>
    %73 = vector.extract_strided_slice %72 {offsets = [0, 0], sizes = [16, 64], strides = [1, 1]} : vector<16x192xf32> to vector<16x64xf32>
    %74 = vector.extract_strided_slice %72 {offsets = [0, 64], sizes = [16, 64], strides = [1, 1]} : vector<16x192xf32> to vector<16x64xf32>
    %75 = vector.extract_strided_slice %72 {offsets = [0, 128], sizes = [16, 64], strides = [1, 1]} : vector<16x192xf32> to vector<16x64xf32>
    %76 = vector.extract_strided_slice %73 {offsets = [0, 0], sizes = [16, 32], strides = [1, 1]} : vector<16x64xf32> to vector<16x32xf32>
    %77 = vector.extract_strided_slice %74 {offsets = [0, 0], sizes = [16, 32], strides = [1, 1]} : vector<16x64xf32> to vector<16x32xf32>
    %78 = vector.extract_strided_slice %75 {offsets = [0, 0], sizes = [16, 32], strides = [1, 1]} : vector<16x64xf32> to vector<16x32xf32>
    %79 = arith.truncf %76 : vector<16x32xf32> to vector<16x32xbf16>
    %80 = arith.truncf %77 : vector<16x32xf32> to vector<16x32xbf16>
    %cst_38 = arith.constant dense<0.000000e+00> : vector<16x16xf32>
    %81 = tpu.matmul %79, %80, %cst_38 {dimension_numbers = #tpu.dot_dimension_numbers<[1], [1], [0], [0], [0, 0, 1, 0], [], []>} : vector<16x32xbf16>, vector<16x32xbf16>, vector<16x16xf32> -> vector<16x16xf32>
    %82 = arith.addf %81, %38 : vector<16x16xf32>
    %cst_39 = arith.constant dense<0xFF800000> : vector<16xf32>
    %83 = vector.multi_reduction <maximumf>, %82, %cst_39 [1] : vector<16x16xf32> to vector<16xf32>
    %84 = vector.shape_cast %83 : vector<16xf32> to vector<16x1xf32>
    %85 = vector.broadcast %84 : vector<16x1xf32> to vector<16x16xf32>
    %86 = arith.subf %82, %85 : vector<16x16xf32>
    %87 = math.exp %86 : vector<16x16xf32>
    %cst_40 = arith.constant dense<0.000000e+00> : vector<16xf32>
    %88 = vector.multi_reduction <add>, %87, %cst_40 [1] : vector<16x16xf32> to vector<16xf32>
    %89 = vector.shape_cast %88 : vector<16xf32> to vector<16x1xf32>
    %90 = vector.broadcast %89 : vector<16x1xf32> to vector<16x16xf32>
    %91 = arith.divf %87, %90 : vector<16x16xf32>
    %92 = arith.truncf %91 : vector<16x16xf32> to vector<16x16xbf16>
    %93 = arith.truncf %78 : vector<16x32xf32> to vector<16x32xbf16>
    %cst_41 = arith.constant dense<0.000000e+00> : vector<16x32xf32>
    %94 = tpu.matmul %92, %93, %cst_41 {dimension_numbers = #tpu.dot_dimension_numbers<[1], [0], [0], [1], [0, 0, 1, 1], [], []>} : vector<16x16xbf16>, vector<16x32xbf16>, vector<16x32xf32> -> vector<16x32xf32>
    %95 = vector.extract_strided_slice %73 {offsets = [0, 32], sizes = [16, 32], strides = [1, 1]} : vector<16x64xf32> to vector<16x32xf32>
    %96 = vector.extract_strided_slice %74 {offsets = [0, 32], sizes = [16, 32], strides = [1, 1]} : vector<16x64xf32> to vector<16x32xf32>
    %97 = vector.extract_strided_slice %75 {offsets = [0, 32], sizes = [16, 32], strides = [1, 1]} : vector<16x64xf32> to vector<16x32xf32>
    %98 = arith.truncf %95 : vector<16x32xf32> to vector<16x32xbf16>
    %99 = arith.truncf %96 : vector<16x32xf32> to vector<16x32xbf16>
    %cst_42 = arith.constant dense<0.000000e+00> : vector<16x16xf32>
    %100 = tpu.matmul %98, %99, %cst_42 {dimension_numbers = #tpu.dot_dimension_numbers<[1], [1], [0], [0], [0, 0, 1, 0], [], []>} : vector<16x32xbf16>, vector<16x32xbf16>, vector<16x16xf32> -> vector<16x16xf32>
    %101 = arith.addf %100, %38 : vector<16x16xf32>
    %cst_43 = arith.constant dense<0xFF800000> : vector<16xf32>
    %102 = vector.multi_reduction <maximumf>, %101, %cst_43 [1] : vector<16x16xf32> to vector<16xf32>
    %103 = vector.shape_cast %102 : vector<16xf32> to vector<16x1xf32>
    %104 = vector.broadcast %103 : vector<16x1xf32> to vector<16x16xf32>
    %105 = arith.subf %101, %104 : vector<16x16xf32>
    %106 = math.exp %105 : vector<16x16xf32>
    %cst_44 = arith.constant dense<0.000000e+00> : vector<16xf32>
    %107 = vector.multi_reduction <add>, %106, %cst_44 [1] : vector<16x16xf32> to vector<16xf32>
    %108 = vector.shape_cast %107 : vector<16xf32> to vector<16x1xf32>
    %109 = vector.broadcast %108 : vector<16x1xf32> to vector<16x16xf32>
    %110 = arith.divf %106, %109 : vector<16x16xf32>
    %111 = arith.truncf %110 : vector<16x16xf32> to vector<16x16xbf16>
    %112 = arith.truncf %97 : vector<16x32xf32> to vector<16x32xbf16>
    %cst_45 = arith.constant dense<0.000000e+00> : vector<16x32xf32>
    %113 = tpu.matmul %111, %112, %cst_45 {dimension_numbers = #tpu.dot_dimension_numbers<[1], [0], [0], [1], [0, 0, 1, 1], [], []>} : vector<16x16xbf16>, vector<16x32xbf16>, vector<16x32xf32> -> vector<16x32xf32>
    %114 = tpu.concatenate %94, %113 in 1 : vector<16x32xf32>, vector<16x32xf32> -> vector<16x64xf32>
    %c0_46 = arith.constant 0 : index
    %c0_47 = arith.constant 0 : index
    %c0_48 = arith.constant 0 : index
    %115 = vector.load %arg12[%c0_46, %c0_47, %c0_48] : memref<2x64x64xbf16, #tpu.memory_space<vmem>>, vector<1x64x64xbf16>
    %116 = vector.shape_cast %115 : vector<1x64x64xbf16> to vector<64x64xbf16>
    %117 = arith.truncf %114 : vector<16x64xf32> to vector<16x64xbf16>
    %cst_49 = arith.constant dense<0.000000e+00> : vector<16x64xf32>
    %118 = tpu.matmul %117, %116, %cst_49 {dimension_numbers = #tpu.dot_dimension_numbers<[1], [0], [0], [1], [0, 0, 1, 1], [], []>} : vector<16x64xbf16>, vector<64x64xbf16>, vector<16x64xf32> -> vector<16x64xf32>
    %119 = arith.addf %37, %118 : vector<16x64xf32>
    %c0_50 = arith.constant 0 : index
    %c0_51 = arith.constant 0 : index
    %c0_52 = arith.constant 0 : index
    %120 = vector.load %arg13[%c0_50, %c0_51, %c0_52] : memref<2x1x64xf32, #tpu.memory_space<vmem>>, vector<1x1x64xf32>
    %121 = vector.shape_cast %120 : vector<1x1x64xf32> to vector<1x64xf32>
    %122 = vector.broadcast %121 : vector<1x64xf32> to vector<16x64xf32>
    %123 = arith.addf %119, %122 : vector<16x64xf32>
    %c0_53 = arith.constant 0 : index
    %c0_54 = arith.constant 0 : index
    %c0_55 = arith.constant 0 : index
    %124 = vector.load %arg14[%c0_53, %c0_54, %c0_55] : memref<2x1x64xf32, #tpu.memory_space<vmem>>, vector<1x1x64xf32>
    %125 = vector.shape_cast %124 : vector<1x1x64xf32> to vector<1x64xf32>
    %c0_56 = arith.constant 0 : index
    %c0_57 = arith.constant 0 : index
    %c0_58 = arith.constant 0 : index
    %126 = vector.load %arg15[%c0_56, %c0_57, %c0_58] : memref<2x1x64xf32, #tpu.memory_space<vmem>>, vector<1x1x64xf32>
    %127 = vector.shape_cast %126 : vector<1x1x64xf32> to vector<1x64xf32>
    %cst_59 = arith.constant dense<0.000000e+00> : vector<16xf32>
    %128 = vector.multi_reduction <add>, %123, %cst_59 [1] : vector<16x64xf32> to vector<16xf32>
    %129 = vector.shape_cast %128 : vector<16xf32> to vector<16x1xf32>
    %cst_60 = arith.constant 6.400000e+01 : f32
    %130 = vector.broadcast %cst_60 : f32 to vector<16x1xf32>
    %131 = arith.divf %129, %130 : vector<16x1xf32>
    %132 = vector.broadcast %131 : vector<16x1xf32> to vector<16x64xf32>
    %133 = arith.subf %123, %132 : vector<16x64xf32>
    %134 = arith.mulf %133, %133 : vector<16x64xf32>
    %cst_61 = arith.constant dense<0.000000e+00> : vector<16xf32>
    %135 = vector.multi_reduction <add>, %134, %cst_61 [1] : vector<16x64xf32> to vector<16xf32>
    %136 = vector.shape_cast %135 : vector<16xf32> to vector<16x1xf32>
    %cst_62 = arith.constant 6.400000e+01 : f32
    %137 = vector.broadcast %cst_62 : f32 to vector<16x1xf32>
    %138 = arith.divf %136, %137 : vector<16x1xf32>
    %139 = vector.broadcast %131 : vector<16x1xf32> to vector<16x64xf32>
    %140 = arith.subf %123, %139 : vector<16x64xf32>
    %cst_63 = arith.constant 9.99999974E-6 : f32
    %141 = vector.broadcast %cst_63 : f32 to vector<16x1xf32>
    %142 = arith.addf %138, %141 : vector<16x1xf32>
    %143 = math.rsqrt %142 : vector<16x1xf32>
    %144 = vector.broadcast %143 : vector<16x1xf32> to vector<16x64xf32>
    %145 = arith.mulf %140, %144 : vector<16x64xf32>
    %146 = vector.broadcast %125 : vector<1x64xf32> to vector<16x64xf32>
    %147 = arith.mulf %145, %146 : vector<16x64xf32>
    %148 = vector.broadcast %127 : vector<1x64xf32> to vector<16x64xf32>
    %149 = arith.addf %147, %148 : vector<16x64xf32>
    %c0_64 = arith.constant 0 : index
    %c0_65 = arith.constant 0 : index
    %c0_66 = arith.constant 0 : index
    %150 = vector.load %arg16[%c0_64, %c0_65, %c0_66] : memref<2x64x128xbf16, #tpu.memory_space<vmem>>, vector<1x64x128xbf16>
    %151 = vector.shape_cast %150 : vector<1x64x128xbf16> to vector<64x128xbf16>
    %152 = arith.truncf %149 : vector<16x64xf32> to vector<16x64xbf16>
    %cst_67 = arith.constant dense<0.000000e+00> : vector<16x128xf32>
    %153 = tpu.matmul %152, %151, %cst_67 {dimension_numbers = #tpu.dot_dimension_numbers<[1], [0], [0], [1], [0, 0, 1, 1], [], []>} : vector<16x64xbf16>, vector<64x128xbf16>, vector<16x128xf32> -> vector<16x128xf32>
    %c0_68 = arith.constant 0 : index
    %c0_69 = arith.constant 0 : index
    %c0_70 = arith.constant 0 : index
    %154 = vector.load %arg17[%c0_68, %c0_69, %c0_70] : memref<2x1x128xf32, #tpu.memory_space<vmem>>, vector<1x1x128xf32>
    %155 = vector.shape_cast %154 : vector<1x1x128xf32> to vector<1x128xf32>
    %156 = vector.broadcast %155 : vector<1x128xf32> to vector<16x128xf32>
    %157 = arith.addf %153, %156 : vector<16x128xf32>
    %cst_71 = arith.constant 1.702000e+00 : f32
    %158 = vector.broadcast %cst_71 : f32 to vector<16x128xf32>
    %159 = arith.mulf %158, %157 : vector<16x128xf32>
    %160 = arith.negf %159 : vector<16x128xf32>
    %161 = math.exp %160 : vector<16x128xf32>
    %cst_72 = arith.constant 1.000000e+00 : f32
    %162 = vector.broadcast %cst_72 : f32 to vector<16x128xf32>
    %163 = arith.addf %162, %161 : vector<16x128xf32>
    %164 = arith.divf %162, %163 : vector<16x128xf32>
    %165 = arith.mulf %157, %164 : vector<16x128xf32>
    %c0_73 = arith.constant 0 : index
    %c0_74 = arith.constant 0 : index
    %c0_75 = arith.constant 0 : index
    %166 = vector.load %arg18[%c0_73, %c0_74, %c0_75] : memref<2x128x64xbf16, #tpu.memory_space<vmem>>, vector<1x128x64xbf16>
    %167 = vector.shape_cast %166 : vector<1x128x64xbf16> to vector<128x64xbf16>
    %168 = arith.truncf %165 : vector<16x128xf32> to vector<16x128xbf16>
    %cst_76 = arith.constant dense<0.000000e+00> : vector<16x64xf32>
    %169 = tpu.matmul %168, %167, %cst_76 {dimension_numbers = #tpu.dot_dimension_numbers<[1], [0], [0], [1], [0, 0, 1, 1], [], []>} : vector<16x128xbf16>, vector<128x64xbf16>, vector<16x64xf32> -> vector<16x64xf32>
    %170 = arith.addf %123, %169 : vector<16x64xf32>
    %c0_77 = arith.constant 0 : index
    %c0_78 = arith.constant 0 : index
    %c0_79 = arith.constant 0 : index
    %171 = vector.load %arg19[%c0_77, %c0_78, %c0_79] : memref<2x1x64xf32, #tpu.memory_space<vmem>>, vector<1x1x64xf32>
    %172 = vector.shape_cast %171 : vector<1x1x64xf32> to vector<1x64xf32>
    %173 = vector.broadcast %172 : vector<1x64xf32> to vector<16x64xf32>
    %174 = arith.addf %170, %173 : vector<16x64xf32>
    %c1_80 = arith.constant 1 : index
    %c0_81 = arith.constant 0 : index
    %c0_82 = arith.constant 0 : index
    %175 = vector.load %arg8[%c1_80, %c0_81, %c0_82] : memref<2x1x64xf32, #tpu.memory_space<vmem>>, vector<1x1x64xf32>
    %176 = vector.shape_cast %175 : vector<1x1x64xf32> to vector<1x64xf32>
    %c1_83 = arith.constant 1 : index
    %c0_84 = arith.constant 0 : index
    %c0_85 = arith.constant 0 : index
    %177 = vector.load %arg9[%c1_83, %c0_84, %c0_85] : memref<2x1x64xf32, #tpu.memory_space<vmem>>, vector<1x1x64xf32>
    %178 = vector.shape_cast %177 : vector<1x1x64xf32> to vector<1x64xf32>
    %cst_86 = arith.constant dense<0.000000e+00> : vector<16xf32>
    %179 = vector.multi_reduction <add>, %174, %cst_86 [1] : vector<16x64xf32> to vector<16xf32>
    %180 = vector.shape_cast %179 : vector<16xf32> to vector<16x1xf32>
    %cst_87 = arith.constant 6.400000e+01 : f32
    %181 = vector.broadcast %cst_87 : f32 to vector<16x1xf32>
    %182 = arith.divf %180, %181 : vector<16x1xf32>
    %183 = vector.broadcast %182 : vector<16x1xf32> to vector<16x64xf32>
    %184 = arith.subf %174, %183 : vector<16x64xf32>
    %185 = arith.mulf %184, %184 : vector<16x64xf32>
    %cst_88 = arith.constant dense<0.000000e+00> : vector<16xf32>
    %186 = vector.multi_reduction <add>, %185, %cst_88 [1] : vector<16x64xf32> to vector<16xf32>
    %187 = vector.shape_cast %186 : vector<16xf32> to vector<16x1xf32>
    %cst_89 = arith.constant 6.400000e+01 : f32
    %188 = vector.broadcast %cst_89 : f32 to vector<16x1xf32>
    %189 = arith.divf %187, %188 : vector<16x1xf32>
    %190 = vector.broadcast %182 : vector<16x1xf32> to vector<16x64xf32>
    %191 = arith.subf %174, %190 : vector<16x64xf32>
    %cst_90 = arith.constant 9.99999974E-6 : f32
    %192 = vector.broadcast %cst_90 : f32 to vector<16x1xf32>
    %193 = arith.addf %189, %192 : vector<16x1xf32>
    %194 = math.rsqrt %193 : vector<16x1xf32>
    %195 = vector.broadcast %194 : vector<16x1xf32> to vector<16x64xf32>
    %196 = arith.mulf %191, %195 : vector<16x64xf32>
    %197 = vector.broadcast %176 : vector<1x64xf32> to vector<16x64xf32>
    %198 = arith.mulf %196, %197 : vector<16x64xf32>
    %199 = vector.broadcast %178 : vector<1x64xf32> to vector<16x64xf32>
    %200 = arith.addf %198, %199 : vector<16x64xf32>
    %c1_91 = arith.constant 1 : index
    %c0_92 = arith.constant 0 : index
    %c0_93 = arith.constant 0 : index
    %201 = vector.load %arg10[%c1_91, %c0_92, %c0_93] : memref<2x64x192xbf16, #tpu.memory_space<vmem>>, vector<1x64x192xbf16>
    %202 = vector.shape_cast %201 : vector<1x64x192xbf16> to vector<64x192xbf16>
    %203 = arith.truncf %200 : vector<16x64xf32> to vector<16x64xbf16>
    %cst_94 = arith.constant dense<0.000000e+00> : vector<16x192xf32>
    %204 = tpu.matmul %203, %202, %cst_94 {dimension_numbers = #tpu.dot_dimension_numbers<[1], [0], [0], [1], [0, 0, 1, 1], [], []>} : vector<16x64xbf16>, vector<64x192xbf16>, vector<16x192xf32> -> vector<16x192xf32>
    %c1_95 = arith.constant 1 : index
    %c0_96 = arith.constant 0 : index
    %c0_97 = arith.constant 0 : index
    %205 = vector.load %arg11[%c1_95, %c0_96, %c0_97] : memref<2x1x192xf32, #tpu.memory_space<vmem>>, vector<1x1x192xf32>
    %206 = vector.shape_cast %205 : vector<1x1x192xf32> to vector<1x192xf32>
    %207 = vector.broadcast %206 : vector<1x192xf32> to vector<16x192xf32>
    %208 = arith.addf %204, %207 : vector<16x192xf32>
    %209 = vector.extract_strided_slice %208 {offsets = [0, 0], sizes = [16, 64], strides = [1, 1]} : vector<16x192xf32> to vector<16x64xf32>
    %210 = vector.extract_strided_slice %208 {offsets = [0, 64], sizes = [16, 64], strides = [1, 1]} : vector<16x192xf32> to vector<16x64xf32>
    %211 = vector.extract_strided_slice %208 {offsets = [0, 128], sizes = [16, 64], strides = [1, 1]} : vector<16x192xf32> to vector<16x64xf32>
    %212 = vector.extract_strided_slice %209 {offsets = [0, 0], sizes = [16, 32], strides = [1, 1]} : vector<16x64xf32> to vector<16x32xf32>
    %213 = vector.extract_strided_slice %210 {offsets = [0, 0], sizes = [16, 32], strides = [1, 1]} : vector<16x64xf32> to vector<16x32xf32>
    %214 = vector.extract_strided_slice %211 {offsets = [0, 0], sizes = [16, 32], strides = [1, 1]} : vector<16x64xf32> to vector<16x32xf32>
    %215 = arith.truncf %212 : vector<16x32xf32> to vector<16x32xbf16>
    %216 = arith.truncf %213 : vector<16x32xf32> to vector<16x32xbf16>
    %cst_98 = arith.constant dense<0.000000e+00> : vector<16x16xf32>
    %217 = tpu.matmul %215, %216, %cst_98 {dimension_numbers = #tpu.dot_dimension_numbers<[1], [1], [0], [0], [0, 0, 1, 0], [], []>} : vector<16x32xbf16>, vector<16x32xbf16>, vector<16x16xf32> -> vector<16x16xf32>
    %218 = arith.addf %217, %38 : vector<16x16xf32>
    %cst_99 = arith.constant dense<0xFF800000> : vector<16xf32>
    %219 = vector.multi_reduction <maximumf>, %218, %cst_99 [1] : vector<16x16xf32> to vector<16xf32>
    %220 = vector.shape_cast %219 : vector<16xf32> to vector<16x1xf32>
    %221 = vector.broadcast %220 : vector<16x1xf32> to vector<16x16xf32>
    %222 = arith.subf %218, %221 : vector<16x16xf32>
    %223 = math.exp %222 : vector<16x16xf32>
    %cst_100 = arith.constant dense<0.000000e+00> : vector<16xf32>
    %224 = vector.multi_reduction <add>, %223, %cst_100 [1] : vector<16x16xf32> to vector<16xf32>
    %225 = vector.shape_cast %224 : vector<16xf32> to vector<16x1xf32>
    %226 = vector.broadcast %225 : vector<16x1xf32> to vector<16x16xf32>
    %227 = arith.divf %223, %226 : vector<16x16xf32>
    %228 = arith.truncf %227 : vector<16x16xf32> to vector<16x16xbf16>
    %229 = arith.truncf %214 : vector<16x32xf32> to vector<16x32xbf16>
    %cst_101 = arith.constant dense<0.000000e+00> : vector<16x32xf32>
    %230 = tpu.matmul %228, %229, %cst_101 {dimension_numbers = #tpu.dot_dimension_numbers<[1], [0], [0], [1], [0, 0, 1, 1], [], []>} : vector<16x16xbf16>, vector<16x32xbf16>, vector<16x32xf32> -> vector<16x32xf32>
    %231 = vector.extract_strided_slice %209 {offsets = [0, 32], sizes = [16, 32], strides = [1, 1]} : vector<16x64xf32> to vector<16x32xf32>
    %232 = vector.extract_strided_slice %210 {offsets = [0, 32], sizes = [16, 32], strides = [1, 1]} : vector<16x64xf32> to vector<16x32xf32>
    %233 = vector.extract_strided_slice %211 {offsets = [0, 32], sizes = [16, 32], strides = [1, 1]} : vector<16x64xf32> to vector<16x32xf32>
    %234 = arith.truncf %231 : vector<16x32xf32> to vector<16x32xbf16>
    %235 = arith.truncf %232 : vector<16x32xf32> to vector<16x32xbf16>
    %cst_102 = arith.constant dense<0.000000e+00> : vector<16x16xf32>
    %236 = tpu.matmul %234, %235, %cst_102 {dimension_numbers = #tpu.dot_dimension_numbers<[1], [1], [0], [0], [0, 0, 1, 0], [], []>} : vector<16x32xbf16>, vector<16x32xbf16>, vector<16x16xf32> -> vector<16x16xf32>
    %237 = arith.addf %236, %38 : vector<16x16xf32>
    %cst_103 = arith.constant dense<0xFF800000> : vector<16xf32>
    %238 = vector.multi_reduction <maximumf>, %237, %cst_103 [1] : vector<16x16xf32> to vector<16xf32>
    %239 = vector.shape_cast %238 : vector<16xf32> to vector<16x1xf32>
    %240 = vector.broadcast %239 : vector<16x1xf32> to vector<16x16xf32>
    %241 = arith.subf %237, %240 : vector<16x16xf32>
    %242 = math.exp %241 : vector<16x16xf32>
    %cst_104 = arith.constant dense<0.000000e+00> : vector<16xf32>
    %243 = vector.multi_reduction <add>, %242, %cst_104 [1] : vector<16x16xf32> to vector<16xf32>
    %244 = vector.shape_cast %243 : vector<16xf32> to vector<16x1xf32>
    %245 = vector.broadcast %244 : vector<16x1xf32> to vector<16x16xf32>
    %246 = arith.divf %242, %245 : vector<16x16xf32>
    %247 = arith.truncf %246 : vector<16x16xf32> to vector<16x16xbf16>
    %248 = arith.truncf %233 : vector<16x32xf32> to vector<16x32xbf16>
    %cst_105 = arith.constant dense<0.000000e+00> : vector<16x32xf32>
    %249 = tpu.matmul %247, %248, %cst_105 {dimension_numbers = #tpu.dot_dimension_numbers<[1], [0], [0], [1], [0, 0, 1, 1], [], []>} : vector<16x16xbf16>, vector<16x32xbf16>, vector<16x32xf32> -> vector<16x32xf32>
    %250 = tpu.concatenate %230, %249 in 1 : vector<16x32xf32>, vector<16x32xf32> -> vector<16x64xf32>
    %c1_106 = arith.constant 1 : index
    %c0_107 = arith.constant 0 : index
    %c0_108 = arith.constant 0 : index
    %251 = vector.load %arg12[%c1_106, %c0_107, %c0_108] : memref<2x64x64xbf16, #tpu.memory_space<vmem>>, vector<1x64x64xbf16>
    %252 = vector.shape_cast %251 : vector<1x64x64xbf16> to vector<64x64xbf16>
    %253 = arith.truncf %250 : vector<16x64xf32> to vector<16x64xbf16>
    %cst_109 = arith.constant dense<0.000000e+00> : vector<16x64xf32>
    %254 = tpu.matmul %253, %252, %cst_109 {dimension_numbers = #tpu.dot_dimension_numbers<[1], [0], [0], [1], [0, 0, 1, 1], [], []>} : vector<16x64xbf16>, vector<64x64xbf16>, vector<16x64xf32> -> vector<16x64xf32>
    %255 = arith.addf %174, %254 : vector<16x64xf32>
    %c1_110 = arith.constant 1 : index
    %c0_111 = arith.constant 0 : index
    %c0_112 = arith.constant 0 : index
    %256 = vector.load %arg13[%c1_110, %c0_111, %c0_112] : memref<2x1x64xf32, #tpu.memory_space<vmem>>, vector<1x1x64xf32>
    %257 = vector.shape_cast %256 : vector<1x1x64xf32> to vector<1x64xf32>
    %258 = vector.broadcast %257 : vector<1x64xf32> to vector<16x64xf32>
    %259 = arith.addf %255, %258 : vector<16x64xf32>
    %c1_113 = arith.constant 1 : index
    %c0_114 = arith.constant 0 : index
    %c0_115 = arith.constant 0 : index
    %260 = vector.load %arg14[%c1_113, %c0_114, %c0_115] : memref<2x1x64xf32, #tpu.memory_space<vmem>>, vector<1x1x64xf32>
    %261 = vector.shape_cast %260 : vector<1x1x64xf32> to vector<1x64xf32>
    %c1_116 = arith.constant 1 : index
    %c0_117 = arith.constant 0 : index
    %c0_118 = arith.constant 0 : index
    %262 = vector.load %arg15[%c1_116, %c0_117, %c0_118] : memref<2x1x64xf32, #tpu.memory_space<vmem>>, vector<1x1x64xf32>
    %263 = vector.shape_cast %262 : vector<1x1x64xf32> to vector<1x64xf32>
    %cst_119 = arith.constant dense<0.000000e+00> : vector<16xf32>
    %264 = vector.multi_reduction <add>, %259, %cst_119 [1] : vector<16x64xf32> to vector<16xf32>
    %265 = vector.shape_cast %264 : vector<16xf32> to vector<16x1xf32>
    %cst_120 = arith.constant 6.400000e+01 : f32
    %266 = vector.broadcast %cst_120 : f32 to vector<16x1xf32>
    %267 = arith.divf %265, %266 : vector<16x1xf32>
    %268 = vector.broadcast %267 : vector<16x1xf32> to vector<16x64xf32>
    %269 = arith.subf %259, %268 : vector<16x64xf32>
    %270 = arith.mulf %269, %269 : vector<16x64xf32>
    %cst_121 = arith.constant dense<0.000000e+00> : vector<16xf32>
    %271 = vector.multi_reduction <add>, %270, %cst_121 [1] : vector<16x64xf32> to vector<16xf32>
    %272 = vector.shape_cast %271 : vector<16xf32> to vector<16x1xf32>
    %cst_122 = arith.constant 6.400000e+01 : f32
    %273 = vector.broadcast %cst_122 : f32 to vector<16x1xf32>
    %274 = arith.divf %272, %273 : vector<16x1xf32>
    %275 = vector.broadcast %267 : vector<16x1xf32> to vector<16x64xf32>
    %276 = arith.subf %259, %275 : vector<16x64xf32>
    %cst_123 = arith.constant 9.99999974E-6 : f32
    %277 = vector.broadcast %cst_123 : f32 to vector<16x1xf32>
    %278 = arith.addf %274, %277 : vector<16x1xf32>
    %279 = math.rsqrt %278 : vector<16x1xf32>
    %280 = vector.broadcast %279 : vector<16x1xf32> to vector<16x64xf32>
    %281 = arith.mulf %276, %280 : vector<16x64xf32>
    %282 = vector.broadcast %261 : vector<1x64xf32> to vector<16x64xf32>
    %283 = arith.mulf %281, %282 : vector<16x64xf32>
    %284 = vector.broadcast %263 : vector<1x64xf32> to vector<16x64xf32>
    %285 = arith.addf %283, %284 : vector<16x64xf32>
    %c1_124 = arith.constant 1 : index
    %c0_125 = arith.constant 0 : index
    %c0_126 = arith.constant 0 : index
    %286 = vector.load %arg16[%c1_124, %c0_125, %c0_126] : memref<2x64x128xbf16, #tpu.memory_space<vmem>>, vector<1x64x128xbf16>
    %287 = vector.shape_cast %286 : vector<1x64x128xbf16> to vector<64x128xbf16>
    %288 = arith.truncf %285 : vector<16x64xf32> to vector<16x64xbf16>
    %cst_127 = arith.constant dense<0.000000e+00> : vector<16x128xf32>
    %289 = tpu.matmul %288, %287, %cst_127 {dimension_numbers = #tpu.dot_dimension_numbers<[1], [0], [0], [1], [0, 0, 1, 1], [], []>} : vector<16x64xbf16>, vector<64x128xbf16>, vector<16x128xf32> -> vector<16x128xf32>
    %c1_128 = arith.constant 1 : index
    %c0_129 = arith.constant 0 : index
    %c0_130 = arith.constant 0 : index
    %290 = vector.load %arg17[%c1_128, %c0_129, %c0_130] : memref<2x1x128xf32, #tpu.memory_space<vmem>>, vector<1x1x128xf32>
    %291 = vector.shape_cast %290 : vector<1x1x128xf32> to vector<1x128xf32>
    %292 = vector.broadcast %291 : vector<1x128xf32> to vector<16x128xf32>
    %293 = arith.addf %289, %292 : vector<16x128xf32>
    %cst_131 = arith.constant 1.702000e+00 : f32
    %294 = vector.broadcast %cst_131 : f32 to vector<16x128xf32>
    %295 = arith.mulf %294, %293 : vector<16x128xf32>
    %296 = arith.negf %295 : vector<16x128xf32>
    %297 = math.exp %296 : vector<16x128xf32>
    %cst_132 = arith.constant 1.000000e+00 : f32
    %298 = vector.broadcast %cst_132 : f32 to vector<16x128xf32>
    %299 = arith.addf %298, %297 : vector<16x128xf32>
    %300 = arith.divf %298, %299 : vector<16x128xf32>
    %301 = arith.mulf %293, %300 : vector<16x128xf32>
    %c1_133 = arith.constant 1 : index
    %c0_134 = arith.constant 0 : index
    %c0_135 = arith.constant 0 : index
    %302 = vector.load %arg18[%c1_133, %c0_134, %c0_135] : memref<2x128x64xbf16, #tpu.memory_space<vmem>>, vector<1x128x64xbf16>
    %303 = vector.shape_cast %302 : vector<1x128x64xbf16> to vector<128x64xbf16>
    %304 = arith.truncf %301 : vector<16x128xf32> to vector<16x128xbf16>
    %cst_136 = arith.constant dense<0.000000e+00> : vector<16x64xf32>
    %305 = tpu.matmul %304, %303, %cst_136 {dimension_numbers = #tpu.dot_dimension_numbers<[1], [0], [0], [1], [0, 0, 1, 1], [], []>} : vector<16x128xbf16>, vector<128x64xbf16>, vector<16x64xf32> -> vector<16x64xf32>
    %306 = arith.addf %259, %305 : vector<16x64xf32>
    %c1_137 = arith.constant 1 : index
    %c0_138 = arith.constant 0 : index
    %c0_139 = arith.constant 0 : index
    %307 = vector.load %arg19[%c1_137, %c0_138, %c0_139] : memref<2x1x64xf32, #tpu.memory_space<vmem>>, vector<1x1x64xf32>
    %308 = vector.shape_cast %307 : vector<1x1x64xf32> to vector<1x64xf32>
    %309 = vector.broadcast %308 : vector<1x64xf32> to vector<16x64xf32>
    %310 = arith.addf %306, %309 : vector<16x64xf32>
    %311 = vector.extract_strided_slice %310 {offsets = [0, 0], sizes = [1, 64], strides = [1, 1]} : vector<16x64xf32> to vector<1x64xf32>
    %312 = vector.extract_strided_slice %310 {offsets = [8, 0], sizes = [1, 64], strides = [1, 1]} : vector<16x64xf32> to vector<1x64xf32>
    %313 = tpu.concatenate %311, %312 in 0 : vector<1x64xf32>, vector<1x64xf32> -> vector<2x64xf32>
    %c0_140 = arith.constant 0 : index
    %c0_141 = arith.constant 0 : index
    %314 = vector.load %arg20[%c0_140, %c0_141] : memref<1x64xf32, #tpu.memory_space<vmem>>, vector<1x64xf32>
    %c0_142 = arith.constant 0 : index
    %c0_143 = arith.constant 0 : index
    %315 = vector.load %arg21[%c0_142, %c0_143] : memref<1x64xf32, #tpu.memory_space<vmem>>, vector<1x64xf32>
    %cst_144 = arith.constant dense<0.000000e+00> : vector<2xf32>
    %316 = vector.multi_reduction <add>, %313, %cst_144 [1] : vector<2x64xf32> to vector<2xf32>
    %317 = vector.shape_cast %316 : vector<2xf32> to vector<2x1xf32>
    %cst_145 = arith.constant 6.400000e+01 : f32
    %318 = vector.broadcast %cst_145 : f32 to vector<2x1xf32>
    %319 = arith.divf %317, %318 : vector<2x1xf32>
    %320 = vector.broadcast %319 : vector<2x1xf32> to vector<2x64xf32>
    %321 = arith.subf %313, %320 : vector<2x64xf32>
    %322 = arith.mulf %321, %321 : vector<2x64xf32>
    %cst_146 = arith.constant dense<0.000000e+00> : vector<2xf32>
    %323 = vector.multi_reduction <add>, %322, %cst_146 [1] : vector<2x64xf32> to vector<2xf32>
    %324 = vector.shape_cast %323 : vector<2xf32> to vector<2x1xf32>
    %cst_147 = arith.constant 6.400000e+01 : f32
    %325 = vector.broadcast %cst_147 : f32 to vector<2x1xf32>
    %326 = arith.divf %324, %325 : vector<2x1xf32>
    %327 = vector.broadcast %319 : vector<2x1xf32> to vector<2x64xf32>
    %328 = arith.subf %313, %327 : vector<2x64xf32>
    %cst_148 = arith.constant 9.99999974E-6 : f32
    %329 = vector.broadcast %cst_148 : f32 to vector<2x1xf32>
    %330 = arith.addf %326, %329 : vector<2x1xf32>
    %331 = math.rsqrt %330 : vector<2x1xf32>
    %332 = vector.broadcast %331 : vector<2x1xf32> to vector<2x64xf32>
    %333 = arith.mulf %328, %332 : vector<2x64xf32>
    %334 = vector.broadcast %314 : vector<1x64xf32> to vector<2x64xf32>
    %335 = arith.mulf %333, %334 : vector<2x64xf32>
    %336 = vector.broadcast %315 : vector<1x64xf32> to vector<2x64xf32>
    %337 = arith.addf %335, %336 : vector<2x64xf32>
    %c0_149 = arith.constant 0 : index
    %c0_150 = arith.constant 0 : index
    %338 = vector.load %arg22[%c0_149, %c0_150] : memref<64x32xbf16, #tpu.memory_space<vmem>>, vector<64x32xbf16>
    %339 = arith.truncf %337 : vector<2x64xf32> to vector<2x64xbf16>
    %cst_151 = arith.constant dense<0.000000e+00> : vector<2x32xf32>
    %340 = tpu.matmul %339, %338, %cst_151 {dimension_numbers = #tpu.dot_dimension_numbers<[1], [0], [0], [1], [0, 0, 1, 1], [], []>} : vector<2x64xbf16>, vector<64x32xbf16>, vector<2x32xf32> -> vector<2x32xf32>
    %c0_152 = arith.constant 0 : index
    %c0_153 = arith.constant 0 : index
    %341 = vector.load %arg23[%c0_152, %c0_153] : memref<2x32xf32, #tpu.memory_space<vmem>>, vector<2x32xf32>
    tpu.vector_store %arg23[%c0_152, %c0_153], %340 {strides = array<i32>} : memref<2x32xf32, #tpu.memory_space<vmem>>, vector<2x32xf32>,
    return
  }
  func.func @transform_0(%arg0: i32) -> (i32, i32) {
    %c0_i32 = arith.constant 0 : i32
    %c0_i32_0 = arith.constant 0 : i32
    %c0_i32_1 = arith.constant 0 : i32
    return %c0_i32, %c0_i32_0 : i32, i32
  }
  func.func @transform_1(%arg0: i32) -> (i32, i32) {
    %c0_i32 = arith.constant 0 : i32
    %c0_i32_0 = arith.constant 0 : i32
    %c0_i32_1 = arith.constant 0 : i32
    return %c0_i32, %c0_i32_0 : i32, i32
  }
  func.func @transform_2(%arg0: i32) -> (i32, i32) {
    %c0_i32 = arith.constant 0 : i32
    %c0_i32_0 = arith.constant 0 : i32
    %c0_i32_1 = arith.constant 0 : i32
    return %c0_i32, %c0_i32_0 : i32, i32
  }
  func.func @transform_3(%arg0: i32) -> (i32, i32) {
    %c0_i32 = arith.constant 0 : i32
    %c0_i32_0 = arith.constant 0 : i32
    %c0_i32_1 = arith.constant 0 : i32
    return %c0_i32, %c0_i32_0 : i32, i32
  }
  func.func @transform_4(%arg0: i32) -> (i32, i32) {
    %c0_i32 = arith.constant 0 : i32
    %c0_i32_0 = arith.constant 0 : i32
    %c0_i32_1 = arith.constant 0 : i32
    return %c0_i32, %c0_i32_0 : i32, i32
  }
  func.func @transform_5(%arg0: i32) -> (i32, i32) {
    %c0_i32 = arith.constant 0 : i32
    %c0_i32_0 = arith.constant 0 : i32
    %c0_i32_1 = arith.constant 0 : i32
    return %c0_i32, %c0_i32_0 : i32, i32
  }
  func.func @transform_6(%arg0: i32) -> (i32, i32) {
    %c0_i32 = arith.constant 0 : i32
    %c0_i32_0 = arith.constant 0 : i32
    %c0_i32_1 = arith.constant 0 : i32
    return %c0_i32, %c0_i32_0 : i32, i32
  }
  func.func @transform_7(%arg0: i32) -> (i32, i32, i32) {
    %c0_i32 = arith.constant 0 : i32
    %c0_i32_0 = arith.constant 0 : i32
    %c0_i32_1 = arith.constant 0 : i32
    %c0_i32_2 = arith.constant 0 : i32
    return %c0_i32, %c0_i32_0, %c0_i32_1 : i32, i32, i32
  }
  func.func @transform_8(%arg0: i32) -> (i32, i32, i32) {
    %c0_i32 = arith.constant 0 : i32
    %c0_i32_0 = arith.constant 0 : i32
    %c0_i32_1 = arith.constant 0 : i32
    %c0_i32_2 = arith.constant 0 : i32
    return %c0_i32, %c0_i32_0, %c0_i32_1 : i32, i32, i32
  }
  func.func @transform_9(%arg0: i32) -> (i32, i32, i32) {
    %c0_i32 = arith.constant 0 : i32
    %c0_i32_0 = arith.constant 0 : i32
    %c0_i32_1 = arith.constant 0 : i32
    %c0_i32_2 = arith.constant 0 : i32
    return %c0_i32, %c0_i32_0, %c0_i32_1 : i32, i32, i32
  }
  func.func @transform_10(%arg0: i32) -> (i32, i32, i32) {
    %c0_i32 = arith.constant 0 : i32
    %c0_i32_0 = arith.constant 0 : i32
    %c0_i32_1 = arith.constant 0 : i32
    %c0_i32_2 = arith.constant 0 : i32
    return %c0_i32, %c0_i32_0, %c0_i32_1 : i32, i32, i32
  }
  func.func @transform_11(%arg0: i32) -> (i32, i32, i32) {
    %c0_i32 = arith.constant 0 : i32
    %c0_i32_0 = arith.constant 0 : i32
    %c0_i32_1 = arith.constant 0 : i32
    %c0_i32_2 = arith.constant 0 : i32
    return %c0_i32, %c0_i32_0, %c0_i32_1 : i32, i32, i32
  }
  func.func @transform_12(%arg0: i32) -> (i32, i32, i32) {
    %c0_i32 = arith.constant 0 : i32
    %c0_i32_0 = arith.constant 0 : i32
    %c0_i32_1 = arith.constant 0 : i32
    %c0_i32_2 = arith.constant 0 : i32
    return %c0_i32, %c0_i32_0, %c0_i32_1 : i32, i32, i32
  }
  func.func @transform_13(%arg0: i32) -> (i32, i32, i32) {
    %c0_i32 = arith.constant 0 : i32
    %c0_i32_0 = arith.constant 0 : i32
    %c0_i32_1 = arith.constant 0 : i32
    %c0_i32_2 = arith.constant 0 : i32
    return %c0_i32, %c0_i32_0, %c0_i32_1 : i32, i32, i32
  }
  func.func @transform_14(%arg0: i32) -> (i32, i32, i32) {
    %c0_i32 = arith.constant 0 : i32
    %c0_i32_0 = arith.constant 0 : i32
    %c0_i32_1 = arith.constant 0 : i32
    %c0_i32_2 = arith.constant 0 : i32
    return %c0_i32, %c0_i32_0, %c0_i32_1 : i32, i32, i32
  }
  func.func @transform_15(%arg0: i32) -> (i32, i32, i32) {
    %c0_i32 = arith.constant 0 : i32
    %c0_i32_0 = arith.constant 0 : i32
    %c0_i32_1 = arith.constant 0 : i32
    %c0_i32_2 = arith.constant 0 : i32
    return %c0_i32, %c0_i32_0, %c0_i32_1 : i32, i32, i32
  }
  func.func @transform_16(%arg0: i32) -> (i32, i32, i32) {
    %c0_i32 = arith.constant 0 : i32
    %c0_i32_0 = arith.constant 0 : i32
    %c0_i32_1 = arith.constant 0 : i32
    %c0_i32_2 = arith.constant 0 : i32
    return %c0_i32, %c0_i32_0, %c0_i32_1 : i32, i32, i32
  }
  func.func @transform_17(%arg0: i32) -> (i32, i32, i32) {
    %c0_i32 = arith.constant 0 : i32
    %c0_i32_0 = arith.constant 0 : i32
    %c0_i32_1 = arith.constant 0 : i32
    %c0_i32_2 = arith.constant 0 : i32
    return %c0_i32, %c0_i32_0, %c0_i32_1 : i32, i32, i32
  }
  func.func @transform_18(%arg0: i32) -> (i32, i32, i32) {
    %c0_i32 = arith.constant 0 : i32
    %c0_i32_0 = arith.constant 0 : i32
    %c0_i32_1 = arith.constant 0 : i32
    %c0_i32_2 = arith.constant 0 : i32
    return %c0_i32, %c0_i32_0, %c0_i32_1 : i32, i32, i32
  }
  func.func @transform_19(%arg0: i32) -> (i32, i32) {
    %c0_i32 = arith.constant 0 : i32
    %c0_i32_0 = arith.constant 0 : i32
    %c0_i32_1 = arith.constant 0 : i32
    return %c0_i32, %c0_i32_0 : i32, i32
  }
  func.func @transform_20(%arg0: i32) -> (i32, i32) {
    %c0_i32 = arith.constant 0 : i32
    %c0_i32_0 = arith.constant 0 : i32
    %c0_i32_1 = arith.constant 0 : i32
    return %c0_i32, %c0_i32_0 : i32, i32
  }
  func.func @transform_21(%arg0: i32) -> (i32, i32) {
    %c0_i32 = arith.constant 0 : i32
    %c0_i32_0 = arith.constant 0 : i32
    %c0_i32_1 = arith.constant 0 : i32
    return %c0_i32, %c0_i32_0 : i32, i32
  }
  func.func @transform_22(%arg0: i32) -> (i32, i32) {
    %c0_i32 = arith.constant 0 : i32
    %c0_i32_0 = arith.constant 0 : i32
    %c0_i32_1 = arith.constant 0 : i32
    return %c0_i32, %c0_i32_0 : i32, i32
  }
}

</mosaic_0001>

<llo_original>
// kernel: image_prompter_forward.1
$region0: #{image_prompter_forward.1}
  #allocation0 [shape = 'u32[]', space=smem, size = 0x4, offset = 0x4, fixed_abs, tag = 'smem constant byte address 0x4 - core index']
  #allocation1 [shape = 'u32[144,128]{1,0:T(1,128)}', space=vmem, size = 0x12000, scoped, tag = 'internal scratch']
  %s0 = inlined_call_operand.vmem [shape: f32[8,768], index: 0, kind: input, shape index: {}]
  %s1 = inlined_call_operand.vmem [shape: bf16[768,64], index: 1, kind: input, shape index: {}]
  %s2 = inlined_call_operand.vmem [shape: f32[1,64], index: 2, kind: input, shape index: {}]
  %s3 = inlined_call_operand.vmem [shape: f32[5,64], index: 3, kind: input, shape index: {}]
  %s4 = inlined_call_operand.vmem [shape: f32[1,64], index: 4, kind: input, shape index: {}]
  %s5 = inlined_call_operand.vmem [shape: f32[1,64], index: 5, kind: input, shape index: {}]
  %s6 = inlined_call_operand.vmem [shape: f32[16,16], index: 6, kind: input, shape index: {}]
  %s7 = inlined_call_operand.vmem [shape: f32[2,1,64], index: 7, kind: input, shape index: {}]
  %s8 = inlined_call_operand.vmem [shape: f32[2,1,64], index: 8, kind: input, shape index: {}]
  %s9 = inlined_call_operand.vmem [shape: bf16[2,64,192], index: 9, kind: input, shape index: {}]
  %s10 = inlined_call_operand.vmem [shape: f32[2,1,192], index: 10, kind: input, shape index: {}]
  %s11 = inlined_call_operand.vmem [shape: bf16[2,64,64], index: 11, kind: input, shape index: {}]
  %s12 = inlined_call_operand.vmem [shape: f32[2,1,64], index: 12, kind: input, shape index: {}]
  %s13 = inlined_call_operand.vmem [shape: f32[2,1,64], index: 13, kind: input, shape index: {}]
  %s14 = inlined_call_operand.vmem [shape: f32[2,1,64], index: 14, kind: input, shape index: {}]
  %s15 = inlined_call_operand.vmem [shape: bf16[2,64,128], index: 15, kind: input, shape index: {}]
  %s16 = inlined_call_operand.vmem [shape: f32[2,1,128], index: 16, kind: input, shape index: {}]
  %s17 = inlined_call_operand.vmem [shape: bf16[2,128,64], index: 17, kind: input, shape index: {}]
  %s18 = inlined_call_operand.vmem [shape: f32[2,1,64], index: 18, kind: input, shape index: {}]
  %s19 = inlined_call_operand.vmem [shape: f32[1,64], index: 19, kind: input, shape index: {}]
  %s20 = inlined_call_operand.vmem [shape: f32[1,64], index: 20, kind: input, shape index: {}]
  %s21 = inlined_call_operand.vmem [shape: bf16[64,32], index: 21, kind: input, shape index: {}]
  %s22 = inlined_call_operand.hbm [shape: f32[2,32], index: 22, kind: output, shape index: {}]
  %s23 = sld [smem:[#allocation0]]
  $region98: #{image_prompter_forward.1} parent=0
    _
  %s25 = ssub.s32 1, %s23
  %s26 = scalar_select 0, %s25, %s23
  $region1: #{image_prompter_forward.1} parent=0
    #allocation2 [shape = 'u8[1024]{0}', space=vmem, size = 0x400, scoped, tag = 'output window, operand 0, single buffered']
    #allocation3 [shape = 's32[1]{0}', space=sflag, size = 0x4, scoped, tag = 'scoped memory for image_prompter_forward.1']
    %27 = vsyncpa [#allocation3], 0
    // Predicated region
    $region2: #{image_prompter_forward.1} parent=1 // pred_check
      _
    $region3: #{image_prompter_forward.1} parent=1 // pred_check_branch
      %29 = sbr.rel (0) target = $region5
    $region4: #{image_prompter_forward.1} parent=1 // pred_region
      _
    $region5: #{image_prompter_forward.1} parent=1 // pred_fallthru
      _
    // Predicated region
    $region6: #{image_prompter_forward.1} parent=1 // pred_check
      _
    $region7: #{image_prompter_forward.1} parent=1 // pred_check_branch
      %31 = sbr.rel (0) target = $region9
    $region8: #{image_prompter_forward.1} parent=1 // pred_region
      _
    $region9: #{image_prompter_forward.1} parent=1 // pred_fallthru
      _
    // Predicated region
    $region10: #{image_prompter_forward.1} parent=1 // pred_check
      _
    $region11: #{image_prompter_forward.1} parent=1 // pred_check_branch
      %33 = sbr.rel (0) target = $region13
    $region12: #{image_prompter_forward.1} parent=1 // pred_region
      _
    $region13: #{image_prompter_forward.1} parent=1 // pred_fallthru
      _
    // Predicated region
    $region14: #{image_prompter_forward.1} parent=1 // pred_check
      _
    $region15: #{image_prompter_forward.1} parent=1 // pred_check_branch
      %35 = sbr.rel (0) target = $region17
    $region16: #{image_prompter_forward.1} parent=1 // pred_region
      _
    $region17: #{image_prompter_forward.1} parent=1 // pred_fallthru
      _
    // Predicated region
    $region18: #{image_prompter_forward.1} parent=1 // pred_check
      _
    $region19: #{image_prompter_forward.1} parent=1 // pred_check_branch
      %37 = sbr.rel (0) target = $region21
    $region20: #{image_prompter_forward.1} parent=1 // pred_region
      _
    $region21: #{image_prompter_forward.1} parent=1 // pred_fallthru
      _
    // Predicated region
    $region22: #{image_prompter_forward.1} parent=1 // pred_check
      _
    $region23: #{image_prompter_forward.1} parent=1 // pred_check_branch
      %39 = sbr.rel (0) target = $region25
    $region24: #{image_prompter_forward.1} parent=1 // pred_region
      _
    $region25: #{image_prompter_forward.1} parent=1 // pred_fallthru
      _
    // Predicated region
    $region26: #{image_prompter_forward.1} parent=1 // pred_check
      _
    $region27: #{image_prompter_forward.1} parent=1 // pred_check_branch
      %41 = sbr.rel (0) target = $region29
    $region28: #{image_prompter_forward.1} parent=1 // pred_region
      _
    $region29: #{image_prompter_forward.1} parent=1 // pred_fallthru
      _
    // Predicated region
    $region30: #{image_prompter_forward.1} parent=1 // pred_check
      _
    $region31: #{image_prompter_forward.1} parent=1 // pred_check_branch
      %43 = sbr.rel (0) target = $region33
    $region32: #{image_prompter_forward.1} parent=1 // pred_region
      _
    $region33: #{image_prompter_forward.1} parent=1 // pred_fallthru
      _
    // Predicated region
    $region34: #{image_prompter_forward.1} parent=1 // pred_check
      _
    $region35: #{image_prompter_forward.1} parent=1 // pred_check_branch
      %45 = sbr.rel (0) target = $region37
    $region36: #{image_prompter_forward.1} parent=1 // pred_region
      _
    $region37: #{image_prompter_forward.1} parent=1 // pred_fallthru
      _
    // Predicated region
    $region38: #{image_prompter_forward.1} parent=1 // pred_check
      _
    $region39: #{image_prompter_forward.1} parent=1 // pred_check_branch
      %47 = sbr.rel (0) target = $region41
    $region40: #{image_prompter_forward.1} parent=1 // pred_region
      _
    $region41: #{image_prompter_forward.1} parent=1 // pred_fallthru
      _
    // Predicated region
    $region42: #{image_prompter_forward.1} parent=1 // pred_check
      _
    $region43: #{image_prompter_forward.1} parent=1 // pred_check_branch
      %49 = sbr.rel (0) target = $region45
    $region44: #{image_prompter_forward.1} parent=1 // pred_region
      _
    $region45: #{image_prompter_forward.1} parent=1 // pred_fallthru
      _
    // Predicated region
    $region46: #{image_prompter_forward.1} parent=1 // pred_check
      _
    $region47: #{image_prompter_forward.1} parent=1 // pred_check_branch
      %51 = sbr.rel (0) target = $region49
    $region48: #{image_prompter_forward.1} parent=1 // pred_region
      _
    $region49: #{image_prompter_forward.1} parent=1 // pred_fallthru
      _
    // Predicated region
    $region50: #{image_prompter_forward.1} parent=1 // pred_check
      _
    $region51: #{image_prompter_forward.1} parent=1 // pred_check_branch
      %53 = sbr.rel (0) target = $region53
    $region52: #{image_prompter_forward.1} parent=1 // pred_region
      _
    $region53: #{image_prompter_forward.1} parent=1 // pred_fallthru
      _
    // Predicated region
    $region54: #{image_prompter_forward.1} parent=1 // pred_check
      _
    $region55: #{image_prompter_forward.1} parent=1 // pred_check_branch
      %55 = sbr.rel (0) target = $region57
    $region56: #{image_prompter_forward.1} parent=1 // pred_region
      _
    $region57: #{image_prompter_forward.1} parent=1 // pred_fallthru
      _
    // Predicated region
    $region58: #{image_prompter_forward.1} parent=1 // pred_check
      _
    $region59: #{image_prompter_forward.1} parent=1 // pred_check_branch
      %57 = sbr.rel (0) target = $region61
    $region60: #{image_prompter_forward.1} parent=1 // pred_region
      _
    $region61: #{image_prompter_forward.1} parent=1 // pred_fallthru
      _
    // Predicated region
    $region62: #{image_prompter_forward.1} parent=1 // pred_check
      _
    $region63: #{image_prompter_forward.1} parent=1 // pred_check_branch
      %59 = sbr.rel (0) target = $region65
    $region64: #{image_prompter_forward.1} parent=1 // pred_region
      _
    $region65: #{image_prompter_forward.1} parent=1 // pred_fallthru
      _
    // Predicated region
    $region66: #{image_prompter_forward.1} parent=1 // pred_check
      _
    $region67: #{image_prompter_forward.1} parent=1 // pred_check_branch
      %61 = sbr.rel (0) target = $region69
    $region68: #{image_prompter_forward.1} parent=1 // pred_region
      _
    $region69: #{image_prompter_forward.1} parent=1 // pred_fallthru
      _
    // Predicated region
    $region70: #{image_prompter_forward.1} parent=1 // pred_check
      _
    $region71: #{image_prompter_forward.1} parent=1 // pred_check_branch
      %63 = sbr.rel (0) target = $region73
    $region72: #{image_prompter_forward.1} parent=1 // pred_region
      _
    $region73: #{image_prompter_forward.1} parent=1 // pred_fallthru
      _
    // Predicated region
    $region74: #{image_prompter_forward.1} parent=1 // pred_check
      _
    $region75: #{image_prompter_forward.1} parent=1 // pred_check_branch
      %65 = sbr.rel (0) target = $region77
    $region76: #{image_prompter_forward.1} parent=1 // pred_region
      _
    $region77: #{image_prompter_forward.1} parent=1 // pred_fallthru
      _
    // Predicated region
    $region78: #{image_prompter_forward.1} parent=1 // pred_check
      _
    $region79: #{image_prompter_forward.1} parent=1 // pred_check_branch
      %67 = sbr.rel (0) target = $region81
    $region80: #{image_prompter_forward.1} parent=1 // pred_region
      _
    $region81: #{image_prompter_forward.1} parent=1 // pred_fallthru
      _
    // Predicated region
    $region82: #{image_prompter_forward.1} parent=1 // pred_check
      _
    $region83: #{image_prompter_forward.1} parent=1 // pred_check_branch
      %69 = sbr.rel (0) target = $region85
    $region84: #{image_prompter_forward.1} parent=1 // pred_region
      _
    $region85: #{image_prompter_forward.1} parent=1 // pred_fallthru
      _
    // Predicated region
    $region86: #{image_prompter_forward.1} parent=1 // pred_check
      _
    $region87: #{image_prompter_forward.1} parent=1 // pred_check_branch
      %71 = sbr.rel (0) target = $region89
    $region88: #{image_prompter_forward.1} parent=1 // pred_region
      _
    $region89: #{image_prompter_forward.1} parent=1 // pred_fallthru
      _
    %v73 = vld [vmem:[%s0] sm:$0xff]
    %v74 = vld [vmem:[%s0 + $0x8] sm:$0xff]
    %v75 = vld [vmem:[%s0 + $0x10] sm:$0xff]
    %v76 = vld [vmem:[%s0 + $0x18] sm:$0xff]
    %v77 = vld [vmem:[%s0 + $0x20] sm:$0xff]
    %v78 = vld [vmem:[%s0 + $0x28] sm:$0xff]
    %v79 = vld [vmem:[%s1] sm:$0xf]
    %v80 = vld [vmem:[%s1 + $0x4] sm:$0xf]
    %v81 = vld [vmem:[%s1 + $0x8] sm:$0xf]
    %v82 = vld [vmem:[%s1 + $0xc] sm:$0xf]
    %v83 = vld [vmem:[%s1 + $0x10] sm:$0xf]
    %v84 = vld [vmem:[%s1 + $0x14] sm:$0xf]
    %v85 = vld [vmem:[%s1 + $0x18] sm:$0xf]
    %v86 = vld [vmem:[%s1 + $0x1c] sm:$0xf]
    %v87 = vld [vmem:[%s1 + $0x20] sm:$0xf]
    %v88 = vld [vmem:[%s1 + $0x24] sm:$0xf]
    %v89 = vld [vmem:[%s1 + $0x28] sm:$0xf]
    %v90 = vld [vmem:[%s1 + $0x2c] sm:$0xf]
    %v91 = vld [vmem:[%s1 + $0x30] sm:$0xf]
    %v92 = vld [vmem:[%s1 + $0x34] sm:$0xf]
    %v93 = vld [vmem:[%s1 + $0x38] sm:$0xf]
    %v94 = vld [vmem:[%s1 + $0x3c] sm:$0xf]
    %v95 = vld [vmem:[%s1 + $0x40] sm:$0xf]
    %v96 = vld [vmem:[%s1 + $0x44] sm:$0xf]
    %v97 = vld [vmem:[%s1 + $0x48] sm:$0xf]
    %v98 = vld [vmem:[%s1 + $0x4c] sm:$0xf]
    %v99 = vld [vmem:[%s1 + $0x50] sm:$0xf]
    %v100 = vld [vmem:[%s1 + $0x54] sm:$0xf]
    %v101 = vld [vmem:[%s1 + $0x58] sm:$0xf]
    %v102 = vld [vmem:[%s1 + $0x5c] sm:$0xf]
    %v103 = vld [vmem:[%s1 + $0x60] sm:$0xf]
    %v104 = vld [vmem:[%s1 + $0x64] sm:$0xf]
    %v105 = vld [vmem:[%s1 + $0x68] sm:$0xf]
    %v106 = vld [vmem:[%s1 + $0x6c] sm:$0xf]
    %v107 = vld [vmem:[%s1 + $0x70] sm:$0xf]
    %v108 = vld [vmem:[%s1 + $0x74] sm:$0xf]
    %v109 = vld [vmem:[%s1 + $0x78] sm:$0xf]
    %v110 = vld [vmem:[%s1 + $0x7c] sm:$0xf]
    %v111 = vld [vmem:[%s1 + $0x80] sm:$0xf]
    %v112 = vld [vmem:[%s1 + $0x84] sm:$0xf]
    %v113 = vld [vmem:[%s1 + $0x88] sm:$0xf]
    %v114 = vld [vmem:[%s1 + $0x8c] sm:$0xf]
    %v115 = vld [vmem:[%s1 + $0x90] sm:$0xf]
    %v116 = vld [vmem:[%s1 + $0x94] sm:$0xf]
    %v117 = vld [vmem:[%s1 + $0x98] sm:$0xf]
    %v118 = vld [vmem:[%s1 + $0x9c] sm:$0xf]
    %v119 = vld [vmem:[%s1 + $0xa0] sm:$0xf]
    %v120 = vld [vmem:[%s1 + $0xa4] sm:$0xf]
    %v121 = vld [vmem:[%s1 + $0xa8] sm:$0xf]
    %v122 = vld [vmem:[%s1 + $0xac] sm:$0xf]
    %v123 = vld [vmem:[%s1 + $0xb0] sm:$0xf]
    %v124 = vld [vmem:[%s1 + $0xb4] sm:$0xf]
    %v125 = vld [vmem:[%s1 + $0xb8] sm:$0xf]
    %v126 = vld [vmem:[%s1 + $0xbc] sm:$0xf]
    %v127 = vld [vmem:[%s1 + $0xc0] sm:$0xf]
    %v128 = vld [vmem:[%s1 + $0xc4] sm:$0xf]
    %v129 = vld [vmem:[%s1 + $0xc8] sm:$0xf]
    %v130 = vld [vmem:[%s1 + $0xcc] sm:$0xf]
    %v131 = vld [vmem:[%s1 + $0xd0] sm:$0xf]
    %v132 = vld [vmem:[%s1 + $0xd4] sm:$0xf]
    %v133 = vld [vmem:[%s1 + $0xd8] sm:$0xf]
    %v134 = vld [vmem:[%s1 + $0xdc] sm:$0xf]
    %v135 = vld [vmem:[%s1 + $0xe0] sm:$0xf]
    %v136 = vld [vmem:[%s1 + $0xe4] sm:$0xf]
    %v137 = vld [vmem:[%s1 + $0xe8] sm:$0xf]
    %v138 = vld [vmem:[%s1 + $0xec] sm:$0xf]
    %v139 = vld [vmem:[%s1 + $0xf0] sm:$0xf]
    %v140 = vld [vmem:[%s1 + $0xf4] sm:$0xf]
    %v141 = vld [vmem:[%s1 + $0xf8] sm:$0xf]
    %v142 = vld [vmem:[%s1 + $0xfc] sm:$0xf]
    %v143 = vld [vmem:[%s1 + $0x100] sm:$0xf]
    %v144 = vld [vmem:[%s1 + $0x104] sm:$0xf]
    %v145 = vld [vmem:[%s1 + $0x108] sm:$0xf]
    %v146 = vld [vmem:[%s1 + $0x10c] sm:$0xf]
    %v147 = vld [vmem:[%s1 + $0x110] sm:$0xf]
    %v148 = vld [vmem:[%s1 + $0x114] sm:$0xf]
    %v149 = vld [vmem:[%s1 + $0x118] sm:$0xf]
    %v150 = vld [vmem:[%s1 + $0x11c] sm:$0xf]
    %v151 = vld [vmem:[%s1 + $0x120] sm:$0xf]
    %v152 = vld [vmem:[%s1 + $0x124] sm:$0xf]
    %v153 = vld [vmem:[%s1 + $0x128] sm:$0xf]
    %v154 = vld [vmem:[%s1 + $0x12c] sm:$0xf]
    %v155 = vld [vmem:[%s1 + $0x130] sm:$0xf]
    %v156 = vld [vmem:[%s1 + $0x134] sm:$0xf]
    %v157 = vld [vmem:[%s1 + $0x138] sm:$0xf]
    %v158 = vld [vmem:[%s1 + $0x13c] sm:$0xf]
    %v159 = vld [vmem:[%s1 + $0x140] sm:$0xf]
    %v160 = vld [vmem:[%s1 + $0x144] sm:$0xf]
    %v161 = vld [vmem:[%s1 + $0x148] sm:$0xf]
    %v162 = vld [vmem:[%s1 + $0x14c] sm:$0xf]
    %v163 = vld [vmem:[%s1 + $0x150] sm:$0xf]
    %v164 = vld [vmem:[%s1 + $0x154] sm:$0xf]
    %v165 = vld [vmem:[%s1 + $0x158] sm:$0xf]
    %v166 = vld [vmem:[%s1 + $0x15c] sm:$0xf]
    %v167 = vld [vmem:[%s1 + $0x160] sm:$0xf]
    %v168 = vld [vmem:[%s1 + $0x164] sm:$0xf]
    %v169 = vld [vmem:[%s1 + $0x168] sm:$0xf]
    %v170 = vld [vmem:[%s1 + $0x16c] sm:$0xf]
    %v171 = vld [vmem:[%s1 + $0x170] sm:$0xf]
    %v172 = vld [vmem:[%s1 + $0x174] sm:$0xf]
    %v173 = vld [vmem:[%s1 + $0x178] sm:$0xf]
    %v174 = vld [vmem:[%s1 + $0x17c] sm:$0xf]
    %v175 = vpack.c.bf16 %v73, %v73
    %v176 = vpack.c.bf16 %v74, %v74
    %v177 = vpack.c.bf16 %v75, %v75
    %v178 = vpack.c.bf16 %v76, %v76
    %v179 = vpack.c.bf16 %v77, %v77
    %v180 = vpack.c.bf16 %v78, %v78
    %v277 = vunpack.c.l.b16 %v79
    %v278 = vunpack.c.l.b16 %v80
    %v279 = vunpack.c.l.b16 %v81
    %v280 = vunpack.c.l.b16 %v82
    %v281 = vunpack.c.l.b16 %v83
    %v282 = vunpack.c.l.b16 %v84
    %v283 = vunpack.c.l.b16 %v85
    %v284 = vunpack.c.l.b16 %v86
    %v285 = vunpack.c.l.b16 %v87
    %v286 = vunpack.c.l.b16 %v88
    %v287 = vunpack.c.l.b16 %v89
    %v288 = vunpack.c.l.b16 %v90
    %v289 = vunpack.c.l.b16 %v91
    %v290 = vunpack.c.l.b16 %v92
    %v291 = vunpack.c.l.b16 %v93
    %v292 = vunpack.c.l.b16 %v94
    %v293 = vunpack.c.l.b16 %v95
    %v294 = vunpack.c.l.b16 %v96
    %v295 = vunpack.c.l.b16 %v97
    %v296 = vunpack.c.l.b16 %v98
    %v297 = vunpack.c.l.b16 %v99
    %v298 = vunpack.c.l.b16 %v100
    %v299 = vunpack.c.l.b16 %v101
    %v300 = vunpack.c.l.b16 %v102
    %v301 = vunpack.c.l.b16 %v103
    %v302 = vunpack.c.l.b16 %v104
    %v303 = vunpack.c.l.b16 %v105
    %v304 = vunpack.c.l.b16 %v106
    %v305 = vunpack.c.l.b16 %v107
    %v306 = vunpack.c.l.b16 %v108
    %v307 = vunpack.c.l.b16 %v109
    %v308 = vunpack.c.l.b16 %v110
    %v309 = vunpack.c.l.b16 %v111
    %v310 = vunpack.c.l.b16 %v112
    %v311 = vunpack.c.l.b16 %v113
    %v312 = vunpack.c.l.b16 %v114
    %v313 = vunpack.c.l.b16 %v115
    %v314 = vunpack.c.l.b16 %v116
    %v315 = vunpack.c.l.b16 %v117
    %v316 = vunpack.c.l.b16 %v118
    %v317 = vunpack.c.l.b16 %v119
    %v318 = vunpack.c.l.b16 %v120
    %v319 = vunpack.c.l.b16 %v121
    %v320 = vunpack.c.l.b16 %v122
    %v321 = vunpack.c.l.b16 %v123
    %v322 = vunpack.c.l.b16 %v124
    %v323 = vunpack.c.l.b16 %v125
    %v324 = vunpack.c.l.b16 %v126
    %v325 = vunpack.c.l.b16 %v127
    %v326 = vunpack.c.l.b16 %v128
    %v327 = vunpack.c.l.b16 %v129
    %v328 = vunpack.c.l.b16 %v130
    %v329 = vunpack.c.l.b16 %v131
    %v330 = vunpack.c.l.b16 %v132
    %v331 = vunpack.c.l.b16 %v133
    %v332 = vunpack.c.l.b16 %v134
    %v333 = vunpack.c.l.b16 %v135
    %v334 = vunpack.c.l.b16 %v136
    %v335 = vunpack.c.l.b16 %v137
    %v336 = vunpack.c.l.b16 %v138
    %v337 = vunpack.c.l.b16 %v139
    %v338 = vunpack.c.l.b16 %v140
    %v339 = vunpack.c.l.b16 %v141
    %v340 = vunpack.c.l.b16 %v142
    %v341 = vunpack.c.l.b16 %v143
    %v342 = vunpack.c.l.b16 %v144
    %v343 = vunpack.c.l.b16 %v145
    %v344 = vunpack.c.l.b16 %v146
    %v345 = vunpack.c.l.b16 %v147
    %v346 = vunpack.c.l.b16 %v148
    %v347 = vunpack.c.l.b16 %v149
    %v348 = vunpack.c.l.b16 %v150
    %v349 = vunpack.c.l.b16 %v151
    %v350 = vunpack.c.l.b16 %v152
    %v351 = vunpack.c.l.b16 %v153
    %v352 = vunpack.c.l.b16 %v154
    %v353 = vunpack.c.l.b16 %v155
    %v354 = vunpack.c.l.b16 %v156
    %v355 = vunpack.c.l.b16 %v157
    %v356 = vunpack.c.l.b16 %v158
    %v357 = vunpack.c.l.b16 %v159
    %v358 = vunpack.c.l.b16 %v160
    %v359 = vunpack.c.l.b16 %v161
    %v360 = vunpack.c.l.b16 %v162
    %v361 = vunpack.c.l.b16 %v163
    %v362 = vunpack.c.l.b16 %v164
    %v363 = vunpack.c.l.b16 %v165
    %v364 = vunpack.c.l.b16 %v166
    %v365 = vunpack.c.l.b16 %v167
    %v366 = vunpack.c.l.b16 %v168
    %v367 = vunpack.c.l.b16 %v169
    %v368 = vunpack.c.l.b16 %v170
    %v369 = vunpack.c.l.b16 %v171
    %v370 = vunpack.c.l.b16 %v172
    %v371 = vunpack.c.l.b16 %v173
    %v372 = vunpack.c.l.b16 %v174
    %v373 = vpack.c.b16 %v278, %v277
    %v374 = vpack.c.b16 %v280, %v279
    %v375 = vpack.c.b16 %v282, %v281
    %v376 = vpack.c.b16 %v284, %v283
    %v377 = vpack.c.b16 %v286, %v285
    %v378 = vpack.c.b16 %v288, %v287
    %v379 = vpack.c.b16 %v290, %v289
    %v380 = vpack.c.b16 %v292, %v291
    %v381 = vpack.c.b16 %v294, %v293
    %v382 = vpack.c.b16 %v296, %v295
    %v383 = vpack.c.b16 %v298, %v297
    %v384 = vpack.c.b16 %v300, %v299
    %v385 = vpack.c.b16 %v302, %v301
    %v386 = vpack.c.b16 %v304, %v303
    %v387 = vpack.c.b16 %v306, %v305
    %v388 = vpack.c.b16 %v308, %v307
    %v389 = vpack.c.b16 %v310, %v309
    %v390 = vpack.c.b16 %v312, %v311
    %v391 = vpack.c.b16 %v314, %v313
    %v392 = vpack.c.b16 %v316, %v315
    %v393 = vpack.c.b16 %v318, %v317
    %v394 = vpack.c.b16 %v320, %v319
    %v395 = vpack.c.b16 %v322, %v321
    %v396 = vpack.c.b16 %v324, %v323
    %v397 = vpack.c.b16 %v326, %v325
    %v398 = vpack.c.b16 %v328, %v327
    %v399 = vpack.c.b16 %v330, %v329
    %v400 = vpack.c.b16 %v332, %v331
    %v401 = vpack.c.b16 %v334, %v333
    %v402 = vpack.c.b16 %v336, %v335
    %v403 = vpack.c.b16 %v338, %v337
    %v404 = vpack.c.b16 %v340, %v339
    %v405 = vpack.c.b16 %v342, %v341
    %v406 = vpack.c.b16 %v344, %v343
    %v407 = vpack.c.b16 %v346, %v345
    %v408 = vpack.c.b16 %v348, %v347
    %v409 = vpack.c.b16 %v350, %v349
    %v410 = vpack.c.b16 %v352, %v351
    %v411 = vpack.c.b16 %v354, %v353
    %v412 = vpack.c.b16 %v356, %v355
    %v413 = vpack.c.b16 %v358, %v357
    %v414 = vpack.c.b16 %v360, %v359
    %v415 = vpack.c.b16 %v362, %v361
    %v416 = vpack.c.b16 %v364, %v363
    %v417 = vpack.c.b16 %v366, %v365
    %v418 = vpack.c.b16 %v368, %v367
    %v419 = vpack.c.b16 %v370, %v369
    %v420 = vpack.c.b16 %v372, %v371
    %469 = vmatprep.subr.bf16.mxu0 0
    %470 = vmatpush1.bf16.msra.mxu0 %v373
    %471 = vmatprep.subr.bf16.mxu0 0
    %472 = vmatpush1.bf16.msra.mxu0 %v374
    %473 = vmatprep.subr.bf16.mxu0 0
    %474 = vmatpush1.bf16.msra.mxu0 %v375
    %475 = vmatprep.subr.bf16.mxu0 0
    %476 = vmatpush1.bf16.msra.mxu0 %v376
    %477 = vmatprep.subr.bf16.mxu0 0
    %478 = vmatpush1.bf16.msra.mxu0 %v377
    %479 = vmatprep.subr.bf16.mxu0 0
    %480 = vmatpush1.bf16.msra.mxu0 %v378
    %481 = vmatprep.subr.bf16.mxu0 0
    %482 = vmatpush1.bf16.msra.mxu0 %v379
    %483 = vmatprep.subr.bf16.mxu0 0
    %484 = vmatpush1.bf16.msra.mxu0 %v380
    %485 = vmatprep.subr.bf16.mxu0 0
    %486 = vmatpush1.bf16.msra.mxu0 %v381
    %487 = vmatprep.subr.bf16.mxu0 0
    %488 = vmatpush1.bf16.msra.mxu0 %v382
    %489 = vmatprep.subr.bf16.mxu0 0
    %490 = vmatpush1.bf16.msra.mxu0 %v383
    %491 = vmatprep.subr.bf16.mxu0 0
    %492 = vmatpush1.bf16.msra.mxu0 %v384
    %493 = vmatprep.subr.bf16.mxu0 0
    %494 = vmatpush1.bf16.msra.mxu0 %v385
    %495 = vmatprep.subr.bf16.mxu0 0
    %496 = vmatpush1.bf16.msra.mxu0 %v386
    %497 = vmatprep.subr.bf16.mxu0 0
    %498 = vmatpush1.bf16.msra.mxu0 %v387
    %499 = vmatprep.subr.bf16.mxu0 0
    %500 = vmatpush1.bf16.msra.mxu0 %v388
    %501 = vmatprep.mubr.bf16.mxu0 %v176
    %502 = vmatmul.mubr.bf16.gmra.mrb[0].mxu0 %v175
    %v503 = vpop.f32.mrb[0].mxu0
    %v504 = vadd.f32 0.0, %v503
    %v505 = vpop.f32.mrb[0].mxu0
    %v506 = vpop.f32.mrb[0].mxu0
    %v507 = vpop.f32.mrb[0].mxu0
    %508 = vdwg.mxu0
    %509 = vmatprep.subr.bf16.mxu0 0
    %510 = vmatpush1.bf16.msra.mxu0 %v389
    %511 = vmatprep.subr.bf16.mxu0 0
    %512 = vmatpush1.bf16.msra.mxu0 %v390
    %513 = vmatprep.subr.bf16.mxu0 0
    %514 = vmatpush1.bf16.msra.mxu0 %v391
    %515 = vmatprep.subr.bf16.mxu0 0
    %516 = vmatpush1.bf16.msra.mxu0 %v392
    %517 = vmatprep.subr.bf16.mxu0 0
    %518 = vmatpush1.bf16.msra.mxu0 %v393
    %519 = vmatprep.subr.bf16.mxu0 0
    %520 = vmatpush1.bf16.msra.mxu0 %v394
    %521 = vmatprep.subr.bf16.mxu0 0
    %522 = vmatpush1.bf16.msra.mxu0 %v395
    %523 = vmatprep.subr.bf16.mxu0 0
    %524 = vmatpush1.bf16.msra.mxu0 %v396
    %525 = vmatprep.subr.bf16.mxu0 0
    %526 = vmatpush1.bf16.msra.mxu0 %v397
    %527 = vmatprep.subr.bf16.mxu0 0
    %528 = vmatpush1.bf16.msra.mxu0 %v398
    %529 = vmatprep.subr.bf16.mxu0 0
    %530 = vmatpush1.bf16.msra.mxu0 %v399
    %531 = vmatprep.subr.bf16.mxu0 0
    %532 = vmatpush1.bf16.msra.mxu0 %v400
    %533 = vmatprep.subr.bf16.mxu0 0
    %534 = vmatpush1.bf16.msra.mxu0 %v401
    %535 = vmatprep.subr.bf16.mxu0 0
    %536 = vmatpush1.bf16.msra.mxu0 %v402
    %537 = vmatprep.subr.bf16.mxu0 0
    %538 = vmatpush1.bf16.msra.mxu0 %v403
    %539 = vmatprep.subr.bf16.mxu0 0
    %540 = vmatpush1.bf16.msra.mxu0 %v404
    %541 = vmatprep.mubr.bf16.mxu0 %v178
    %542 = vmatmul.mubr.bf16.gmra.mrb[0].mxu0 %v177
    %v543 = vpop.f32.mrb[0].mxu0
    %v544 = vadd.f32 %v504, %v543
    %v545 = vpop.f32.mrb[0].mxu0
    %v546 = vpop.f32.mrb[0].mxu0
    %v547 = vpop.f32.mrb[0].mxu0
    %548 = vdwg.mxu0
    %549 = vmatprep.subr.bf16.mxu0 0
    %550 = vmatpush1.bf16.msra.mxu0 %v405
    %551 = vmatprep.subr.bf16.mxu0 0
    %552 = vmatpush1.bf16.msra.mxu0 %v406
    %553 = vmatprep.subr.bf16.mxu0 0
    %554 = vmatpush1.bf16.msra.mxu0 %v407
    %555 = vmatprep.subr.bf16.mxu0 0
    %556 = vmatpush1.bf16.msra.mxu0 %v408
    %557 = vmatprep.subr.bf16.mxu0 0
    %558 = vmatpush1.bf16.msra.mxu0 %v409
    %559 = vmatprep.subr.bf16.mxu0 0
    %560 = vmatpush1.bf16.msra.mxu0 %v410
    %561 = vmatprep.subr.bf16.mxu0 0
    %562 = vmatpush1.bf16.msra.mxu0 %v411
    %563 = vmatprep.subr.bf16.mxu0 0
    %564 = vmatpush1.bf16.msra.mxu0 %v412
    %565 = vmatprep.subr.bf16.mxu0 0
    %566 = vmatpush1.bf16.msra.mxu0 %v413
    %567 = vmatprep.subr.bf16.mxu0 0
    %568 = vmatpush1.bf16.msra.mxu0 %v414
    %569 = vmatprep.subr.bf16.mxu0 0
    %570 = vmatpush1.bf16.msra.mxu0 %v415
    %571 = vmatprep.subr.bf16.mxu0 0
    %572 = vmatpush1.bf16.msra.mxu0 %v416
    %573 = vmatprep.subr.bf16.mxu0 0
    %574 = vmatpush1.bf16.msra.mxu0 %v417
    %575 = vmatprep.subr.bf16.mxu0 0
    %576 = vmatpush1.bf16.msra.mxu0 %v418
    %577 = vmatprep.subr.bf16.mxu0 0
    %578 = vmatpush1.bf16.msra.mxu0 %v419
    %579 = vmatprep.subr.bf16.mxu0 0
    %580 = vmatpush1.bf16.msra.mxu0 %v420
    %581 = vmatprep.mubr.bf16.mxu0 %v180
    %582 = vmatmul.mubr.bf16.gmra.mrb[0].mxu0 %v179
    %v583 = vpop.f32.mrb[0].mxu0
    %v584 = vadd.f32 %v544, %v583
    %v585 = vpop.f32.mrb[0].mxu0
    %v586 = vpop.f32.mrb[0].mxu0
    %v587 = vpop.f32.mrb[0].mxu0
    %588 = vdwg.mxu0
    %v589 = vld [vmem:[%s2] sm:$0x1]
    %v590 = vld [vmem:[%s3] sm:$0x1]
    %v591 = vadd.f32 %v589, %v590
    %v592 = vld [vmem:[%s3 + $0x1] sm:$0xf]
    %v593 = vadd.f32 %v584, %v592
    %v595 = vrot.slane %v592, 4
    %v597 = vadd.f32 %v584, %v595
    %v599 = vrot.slane %v593, 7
    %v602 = vrot.slane %v597, 3
    %vm604 = vcmask 1040384
    %v605 = vsel %vm604, %v591, %v599
    %vm606 = vcmask 1044480
    %v607 = vsel %vm606, %v605, 0.0
    %v608 = vsel %vm604, %v591, %v602
    %v609 = vsel %vm606, %v608, 0.0
    %v610 = vld [vmem:[%s4] sm:$0x1]
    %v611 = vld [vmem:[%s5] sm:$0x1]
    %vm612 = vcmask 523264
    %v613 = vsel %vm612, %v607, 0.0
    %614 = vadd.xlane.f32.xlu0 %v613
    %v615 = vpop.xlane.xlu0 %614
    %v616 = vsel %vm612, %v609, 0.0
    %617 = vadd.xlane.f32.xlu0 %v616
    %v618 = vpop.xlane.xlu0 %617
    %v619 = vrcp.pop 64.0
    %v620 = vmul.f32 %v615, %v619
    %v621 = vmul.f32 %v618, %v619
    %v622 = vsub.f32 %v607, %v620
    %v623 = vsub.f32 %v609, %v621
    %v624 = vmul.f32 %v622, %v622
    %v625 = vmul.f32 %v623, %v623
    %v626 = vsel %vm612, %v624, 0.0
    %627 = vadd.xlane.f32.xlu0 %v626
    %v628 = vpop.xlane.xlu0 %627
    %v629 = vsel %vm612, %v625, 0.0
    %630 = vadd.xlane.f32.xlu0 %v629
    %v631 = vpop.xlane.xlu0 %630
    %v632 = vmul.f32 %v628, %v619
    %v633 = vmul.f32 %v631, %v619
    %v634 = vadd.f32 %v632, 1e-05
    %v635 = vadd.f32 %v633, 1e-05
    %v636 = vrsqrt.pop %v634
    %v637 = vrsqrt.pop %v635
    %v638 = vmul.f32 %v622, %v636
    %v639 = vmul.f32 %v623, %v637
    %v641 = vlaneseq
    %v642 = vshrl.u32 %v641, 7
    %v643 = vsub.s32 0, %v642
    %v644 = vrot.slane %v610, %v643
    %v646 = vmul.f32 %v638, %v644
    %v647 = vmul.f32 %v639, %v644
    %v649 = vlaneseq
    %v650 = vshrl.u32 %v649, 7
    %v651 = vsub.s32 0, %v650
    %v652 = vrot.slane %v611, %v651
    %v654 = vadd.f32 %v646, %v652
    %v655 = vadd.f32 %v647, %v652
    %v656 = vld [vmem:[%s6] sm:$0xff]
    %v657 = vld [vmem:[%s6 + $0x8] sm:$0xff]
    %v658 = vld [vmem:[%s7] sm:$0x1]
    %v659 = vld [vmem:[%s8] sm:$0x1]
    %v660 = vsel %vm612, %v654, 0.0
    %661 = vadd.xlane.f32.xlu0 %v660
    %v662 = vpop.xlane.xlu0 %661
    %v663 = vsel %vm612, %v655, 0.0
    %664 = vadd.xlane.f32.xlu0 %v663
    %v665 = vpop.xlane.xlu0 %664
    %v666 = vmul.f32 %v662, %v619
    %v667 = vmul.f32 %v665, %v619
    %v668 = vsub.f32 %v654, %v666
    %v669 = vsub.f32 %v655, %v667
    %v670 = vmul.f32 %v668, %v668
    %v671 = vmul.f32 %v669, %v669
    %v672 = vsel %vm612, %v670, 0.0
    %673 = vadd.xlane.f32.xlu0 %v672
    %v674 = vpop.xlane.xlu0 %673
    %v675 = vsel %vm612, %v671, 0.0
    %676 = vadd.xlane.f32.xlu0 %v675
    %v677 = vpop.xlane.xlu0 %676
    %v678 = vmul.f32 %v674, %v619
    %v679 = vmul.f32 %v677, %v619
    %v680 = vadd.f32 %v678, 1e-05
    %v681 = vadd.f32 %v679, 1e-05
    %v682 = vrsqrt.pop %v680
    %v683 = vrsqrt.pop %v681
    %v684 = vmul.f32 %v668, %v682
    %v685 = vmul.f32 %v669, %v683
    %v687 = vlaneseq
    %v688 = vshrl.u32 %v687, 7
    %v689 = vsub.s32 0, %v688
    %v690 = vrot.slane %v658, %v689
    %v692 = vmul.f32 %v684, %v690
    %v693 = vmul.f32 %v685, %v690
    %v695 = vlaneseq
    %v696 = vshrl.u32 %v695, 7
    %v697 = vsub.s32 0, %v696
    %v698 = vrot.slane %v659, %v697
    %v700 = vadd.f32 %v692, %v698
    %v701 = vadd.f32 %v693, %v698
    %v702 = vld [vmem:[%s9] sm:$0xff]
    %v703 = vld [vmem:[%s9 + $0x8] sm:$0xff]
    %v704 = vld [vmem:[%s9 + $0x10] sm:$0xff]
    %v705 = vld [vmem:[%s9 + $0x18] sm:$0xff]
    %v706 = vld [vmem:[%s9 + $0x20] sm:$0xff]
    %v707 = vld [vmem:[%s9 + $0x28] sm:$0xff]
    %v708 = vld [vmem:[%s9 + $0x30] sm:$0xff]
    %v709 = vld [vmem:[%s9 + $0x38] sm:$0xff]
    %v710 = vpack.c.bf16 %v701, %v700
    %v711 = vld [vmem:[%s10] sm:$0x3]
    %v713 = vlaneseq
    %v714 = vshrl.u32 %v713, 7
    %v715 = vsub.s32 0, %v714
    %v716 = vrot.slane %v711, %v715
    %v717 = vlaneseq
    %v718 = vshrl.u32 %v717, 7
    %v719 = vsub.s32 1, %v718
    %v720 = vrot.slane %v711, %v719
    %v731 = vunpack.c.l.b16 %v702
    %v732 = vunpack.c.h.b16 %v702
    %v733 = vunpack.c.l.b16 %v703
    %v734 = vunpack.c.h.b16 %v703
    %v735 = vunpack.c.l.b16 %v704
    %v736 = vunpack.c.h.b16 %v704
    %v737 = vunpack.c.l.b16 %v705
    %v738 = vunpack.c.h.b16 %v705
    %v739 = vunpack.c.l.b16 %v706
    %v740 = vunpack.c.h.b16 %v706
    %v741 = vunpack.c.l.b16 %v707
    %v742 = vunpack.c.h.b16 %v707
    %v743 = vunpack.c.l.b16 %v708
    %v744 = vunpack.c.h.b16 %v708
    %v745 = vunpack.c.l.b16 %v709
    %v746 = vunpack.c.h.b16 %v709
    %v747 = vpack.c.b16 %v733, %v731
    %v748 = vpack.c.b16 %v734, %v732
    %v749 = vpack.c.b16 %v737, %v735
    %v750 = vpack.c.b16 %v738, %v736
    %v751 = vpack.c.b16 %v741, %v739
    %v752 = vpack.c.b16 %v742, %v740
    %v753 = vpack.c.b16 %v745, %v743
    %v754 = vpack.c.b16 %v746, %v744
    %v764 = vsel %vm612, %v710, 0
    %766 = vmatprep.subr.bf16.mxu0 %v748
    %767 = vmatpush1.bf16.msra.mxu0 %v747
    %768 = vmatprep.subr.bf16.mxu0 %v750
    %769 = vmatpush1.bf16.msra.mxu0 %v749
    %770 = vmatprep.subr.bf16.mxu0 %v752
    %771 = vmatpush1.bf16.msra.mxu0 %v751
    %772 = vmatprep.subr.bf16.mxu0 %v754
    %773 = vmatpush1.bf16.msra.mxu0 %v753
    %774 = vmatprep.subr.bf16.mxu0 0
    %775 = vmatpush1.bf16.msra.mxu0 0
    %776 = vmatprep.subr.bf16.mxu0 0
    %777 = vmatpush1.bf16.msra.mxu0 0
    %778 = vmatprep.subr.bf16.mxu0 0
    %779 = vmatpush1.bf16.msra.mxu0 0
    %780 = vmatprep.subr.bf16.mxu0 0
    %781 = vmatpush1.bf16.msra.mxu0 0
    %782 = vmatprep.subr.bf16.mxu0 0
    %783 = vmatpush1.bf16.msra.mxu0 0
    %784 = vmatprep.subr.bf16.mxu0 0
    %785 = vmatpush1.bf16.msra.mxu0 0
    %786 = vmatprep.subr.bf16.mxu0 0
    %787 = vmatpush1.bf16.msra.mxu0 0
    %788 = vmatprep.subr.bf16.mxu0 0
    %789 = vmatpush1.bf16.msra.mxu0 0
    %790 = vmatprep.subr.bf16.mxu0 0
    %791 = vmatpush1.bf16.msra.mxu0 0
    %792 = vmatprep.subr.bf16.mxu0 0
    %793 = vmatpush1.bf16.msra.mxu0 0
    %794 = vmatprep.subr.bf16.mxu0 0
    %795 = vmatpush1.bf16.msra.mxu0 0
    %796 = vmatprep.subr.bf16.mxu0 0
    %797 = vmatpush1.bf16.msra.mxu0 0
    %798 = vmatprep.mubr.bf16.mxu0 0
    %799 = vmatmul.mubr.bf16.gmra.mrb[0].mxu0 %v764
    %v800 = vpop.f32.mrb[0].mxu0
    %v801 = vadd.f32 %v716, %v800
    %v802 = vpop.f32.mrb[0].mxu0
    %v803 = vadd.f32 %v720, %v802
    %v804 = vpop.f32.mrb[0].mxu0
    %v805 = vadd.f32 %v716, %v804
    %v806 = vpop.f32.mrb[0].mxu0
    %v807 = vadd.f32 %v720, %v806
    %808 = vdwg.mxu0
    %v809 = vpack.c.bf16 %v805, %v801
    %811 = vrot.lane.b32.xlu0 %v809, 64
    %v812 = vpop.permute.xlu0 %811
    %vm813 = vcmask 261120
    %v815 = vsel %vm813, %v809, 0
    %v818 = vsel %vm813, %v812, 0
    %820 = vmatprep.subr.bf16.mxu0 0
    %821 = vmatpush1.bf16.xpose.msra.mxu0 %v818
    %822 = vmatprep.subr.bf16.mxu0 0
    %823 = vmatpush1.bf16.xpose.msra.mxu0 0
    %824 = vmatprep.subr.bf16.mxu0 0
    %825 = vmatpush1.bf16.xpose.msra.mxu0 0
    %826 = vmatprep.subr.bf16.mxu0 0
    %827 = vmatpush1.bf16.xpose.msra.mxu0 0
    %828 = vmatprep.subr.bf16.mxu0 0
    %829 = vmatpush1.bf16.xpose.msra.mxu0 0
    %830 = vmatprep.subr.bf16.mxu0 0
    %831 = vmatpush1.bf16.xpose.msra.mxu0 0
    %832 = vmatprep.subr.bf16.mxu0 0
    %833 = vmatpush1.bf16.xpose.msra.mxu0 0
    %834 = vmatprep.subr.bf16.mxu0 0
    %835 = vmatpush1.bf16.xpose.msra.mxu0 0
    %836 = vmatprep.subr.bf16.mxu0 0
    %837 = vmatpush1.bf16.xpose.msra.mxu0 0
    %838 = vmatprep.subr.bf16.mxu0 0
    %839 = vmatpush1.bf16.xpose.msra.mxu0 0
    %840 = vmatprep.subr.bf16.mxu0 0
    %841 = vmatpush1.bf16.xpose.msra.mxu0 0
    %842 = vmatprep.subr.bf16.mxu0 0
    %843 = vmatpush1.bf16.xpose.msra.mxu0 0
    %844 = vmatprep.subr.bf16.mxu0 0
    %845 = vmatpush1.bf16.xpose.msra.mxu0 0
    %846 = vmatprep.subr.bf16.mxu0 0
    %847 = vmatpush1.bf16.xpose.msra.mxu0 0
    %848 = vmatprep.subr.bf16.mxu0 0
    %849 = vmatpush1.bf16.xpose.msra.mxu0 0
    %850 = vmatprep.subr.bf16.mxu0 0
    %851 = vmatpush1.bf16.xpose.msra.mxu0 0
    %852 = vmatprep.mubr.bf16.mxu0 0
    %853 = vmatmul.mubr.bf16.gmra.mrb[0].mxu0 %v815
    %v854 = vpop.f32.mrb[0].mxu0
    %v855 = vadd.f32 %v656, %v854
    %v856 = vpop.f32.mrb[0].mxu0
    %v857 = vpop.f32.mrb[0].mxu0
    %v858 = vadd.f32 %v657, %v857
    %v859 = vpop.f32.mrb[0].mxu0
    %860 = vdwg.mxu0
    %vm861 = vcmask 130048
    %v862 = vsel %vm861, %v855, -inf
    %863 = vmax.xlane.f32.xlu0 %v862
    %v864 = vpop.xlane.xlu0 %863
    %v865 = vsel %vm861, %v858, -inf
    %866 = vmax.xlane.f32.xlu0 %v865
    %v867 = vpop.xlane.xlu0 %866
    %v868 = vsub.f32 %v855, %v864
    %v869 = vsub.f32 %v858, %v867
    %v870 = vmul.f32 %v868, 1.442695
    %v871 = vpow.pop %v870
    %v872 = vmul.f32 %v869, 1.442695
    %v873 = vpow.pop %v872
    %v874 = vsel %vm861, %v871, 0.0
    %875 = vadd.xlane.f32.xlu0 %v874
    %v876 = vpop.xlane.xlu0 %875
    %v877 = vsel %vm861, %v873, 0.0
    %878 = vadd.xlane.f32.xlu0 %v877
    %v879 = vpop.xlane.xlu0 %878
    %v880 = vrcp.pop %v876
    %v881 = vmul.f32 %v871, %v880
    %v882 = vrcp.pop %v879
    %v883 = vmul.f32 %v873, %v882
    %v884 = vpack.c.bf16 %v883, %v881
    %v885 = vpack.c.bf16 %v807, %v803
    %v887 = vsel %vm861, %v884, 0
    %889 = vmatprep.subr.bf16.mxu0 0
    %890 = vmatpush1.bf16.msra.mxu0 %v885
    %891 = vmatprep.subr.bf16.mxu0 0
    %892 = vmatpush1.bf16.msra.mxu0 0
    %893 = vmatprep.subr.bf16.mxu0 0
    %894 = vmatpush1.bf16.msra.mxu0 0
    %895 = vmatprep.subr.bf16.mxu0 0
    %896 = vmatpush1.bf16.msra.mxu0 0
    %897 = vmatprep.subr.bf16.mxu0 0
    %898 = vmatpush1.bf16.msra.mxu0 0
    %899 = vmatprep.subr.bf16.mxu0 0
    %900 = vmatpush1.bf16.msra.mxu0 0
    %901 = vmatprep.subr.bf16.mxu0 0
    %902 = vmatpush1.bf16.msra.mxu0 0
    %903 = vmatprep.subr.bf16.mxu0 0
    %904 = vmatpush1.bf16.msra.mxu0 0
    %905 = vmatprep.subr.bf16.mxu0 0
    %906 = vmatpush1.bf16.msra.mxu0 0
    %907 = vmatprep.subr.bf16.mxu0 0
    %908 = vmatpush1.bf16.msra.mxu0 0
    %909 = vmatprep.subr.bf16.mxu0 0
    %910 = vmatpush1.bf16.msra.mxu0 0
    %911 = vmatprep.subr.bf16.mxu0 0
    %912 = vmatpush1.bf16.msra.mxu0 0
    %913 = vmatprep.subr.bf16.mxu0 0
    %914 = vmatpush1.bf16.msra.mxu0 0
    %915 = vmatprep.subr.bf16.mxu0 0
    %916 = vmatpush1.bf16.msra.mxu0 0
    %917 = vmatprep.subr.bf16.mxu0 0
    %918 = vmatpush1.bf16.msra.mxu0 0
    %919 = vmatprep.subr.bf16.mxu0 0
    %920 = vmatpush1.bf16.msra.mxu0 0
    %921 = vmatprep.mubr.bf16.mxu0 0
    %922 = vmatmul.mubr.bf16.gmra.mrb[0].mxu0 %v887
    %v923 = vpop.f32.mrb[0].mxu0
    %v924 = vadd.f32 0.0, %v923
    %v925 = vpop.f32.mrb[0].mxu0
    %v926 = vpop.f32.mrb[0].mxu0
    %v927 = vadd.f32 0.0, %v926
    %v928 = vpop.f32.mrb[0].mxu0
    %929 = vdwg.mxu0
    %930 = vrot.lane.b32.xlu0 %v809, 96
    %v931 = vpop.permute.xlu0 %930
    %932 = vrot.lane.b32.xlu0 %v809, 32
    %v933 = vpop.permute.xlu0 %932
    %v935 = vsel %vm813, %v931, 0
    %v938 = vsel %vm813, %v933, 0
    %940 = vmatprep.subr.bf16.mxu0 0
    %941 = vmatpush1.bf16.xpose.msra.mxu0 %v938
    %942 = vmatprep.subr.bf16.mxu0 0
    %943 = vmatpush1.bf16.xpose.msra.mxu0 0
    %944 = vmatprep.subr.bf16.mxu0 0
    %945 = vmatpush1.bf16.xpose.msra.mxu0 0
    %946 = vmatprep.subr.bf16.mxu0 0
    %947 = vmatpush1.bf16.xpose.msra.mxu0 0
    %948 = vmatprep.subr.bf16.mxu0 0
    %949 = vmatpush1.bf16.xpose.msra.mxu0 0
    %950 = vmatprep.subr.bf16.mxu0 0
    %951 = vmatpush1.bf16.xpose.msra.mxu0 0
    %952 = vmatprep.subr.bf16.mxu0 0
    %953 = vmatpush1.bf16.xpose.msra.mxu0 0
    %954 = vmatprep.subr.bf16.mxu0 0
    %955 = vmatpush1.bf16.xpose.msra.mxu0 0
    %956 = vmatprep.subr.bf16.mxu0 0
    %957 = vmatpush1.bf16.xpose.msra.mxu0 0
    %958 = vmatprep.subr.bf16.mxu0 0
    %959 = vmatpush1.bf16.xpose.msra.mxu0 0
    %960 = vmatprep.subr.bf16.mxu0 0
    %961 = vmatpush1.bf16.xpose.msra.mxu0 0
    %962 = vmatprep.subr.bf16.mxu0 0
    %963 = vmatpush1.bf16.xpose.msra.mxu0 0
    %964 = vmatprep.subr.bf16.mxu0 0
    %965 = vmatpush1.bf16.xpose.msra.mxu0 0
    %966 = vmatprep.subr.bf16.mxu0 0
    %967 = vmatpush1.bf16.xpose.msra.mxu0 0
    %968 = vmatprep.subr.bf16.mxu0 0
    %969 = vmatpush1.bf16.xpose.msra.mxu0 0
    %970 = vmatprep.subr.bf16.mxu0 0
    %971 = vmatpush1.bf16.xpose.msra.mxu0 0
    %972 = vmatprep.mubr.bf16.mxu0 0
    %973 = vmatmul.mubr.bf16.gmra.mrb[0].mxu0 %v935
    %v974 = vpop.f32.mrb[0].mxu0
    %v975 = vadd.f32 %v656, %v974
    %v976 = vpop.f32.mrb[0].mxu0
    %v977 = vpop.f32.mrb[0].mxu0
    %v978 = vadd.f32 %v657, %v977
    %v979 = vpop.f32.mrb[0].mxu0
    %980 = vdwg.mxu0
    %v981 = vsel %vm861, %v975, -inf
    %982 = vmax.xlane.f32.xlu0 %v981
    %v983 = vpop.xlane.xlu0 %982
    %v984 = vsel %vm861, %v978, -inf
    %985 = vmax.xlane.f32.xlu0 %v984
    %v986 = vpop.xlane.xlu0 %985
    %v987 = vsub.f32 %v975, %v983
    %v988 = vsub.f32 %v978, %v986
    %v989 = vmul.f32 %v987, 1.442695
    %v990 = vpow.pop %v989
    %v991 = vmul.f32 %v988, 1.442695
    %v992 = vpow.pop %v991
    %v993 = vsel %vm861, %v990, 0.0
    %994 = vadd.xlane.f32.xlu0 %v993
    %v995 = vpop.xlane.xlu0 %994
    %v996 = vsel %vm861, %v992, 0.0
    %997 = vadd.xlane.f32.xlu0 %v996
    %v998 = vpop.xlane.xlu0 %997
    %v999 = vrcp.pop %v995
    %v1000 = vmul.f32 %v990, %v999
    %v1001 = vrcp.pop %v998
    %v1002 = vmul.f32 %v992, %v1001
    %v1003 = vpack.c.bf16 %v1002, %v1000
    %1005 = vrot.lane.b32.xlu0 %v885, 96
    %v1006 = vpop.permute.xlu0 %1005
    %v1009 = vsel %vm861, %v1003, 0
    %1011 = vmatprep.subr.bf16.mxu0 0
    %1012 = vmatpush1.bf16.msra.mxu0 %v1006
    %1013 = vmatprep.subr.bf16.mxu0 0
    %1014 = vmatpush1.bf16.msra.mxu0 0
    %1015 = vmatprep.subr.bf16.mxu0 0
    %1016 = vmatpush1.bf16.msra.mxu0 0
    %1017 = vmatprep.subr.bf16.mxu0 0
    %1018 = vmatpush1.bf16.msra.mxu0 0
    %1019 = vmatprep.subr.bf16.mxu0 0
    %1020 = vmatpush1.bf16.msra.mxu0 0
    %1021 = vmatprep.subr.bf16.mxu0 0
    %1022 = vmatpush1.bf16.msra.mxu0 0
    %1023 = vmatprep.subr.bf16.mxu0 0
    %1024 = vmatpush1.bf16.msra.mxu0 0
    %1025 = vmatprep.subr.bf16.mxu0 0
    %1026 = vmatpush1.bf16.msra.mxu0 0
    %1027 = vmatprep.subr.bf16.mxu0 0
    %1028 = vmatpush1.bf16.msra.mxu0 0
    %1029 = vmatprep.subr.bf16.mxu0 0
    %1030 = vmatpush1.bf16.msra.mxu0 0
    %1031 = vmatprep.subr.bf16.mxu0 0
    %1032 = vmatpush1.bf16.msra.mxu0 0
    %1033 = vmatprep.subr.bf16.mxu0 0
    %1034 = vmatpush1.bf16.msra.mxu0 0
    %1035 = vmatprep.subr.bf16.mxu0 0
    %1036 = vmatpush1.bf16.msra.mxu0 0
    %1037 = vmatprep.subr.bf16.mxu0 0
    %1038 = vmatpush1.bf16.msra.mxu0 0
    %1039 = vmatprep.subr.bf16.mxu0 0
    %1040 = vmatpush1.bf16.msra.mxu0 0
    %1041 = vmatprep.subr.bf16.mxu0 0
    %1042 = vmatpush1.bf16.msra.mxu0 0
    %1043 = vmatprep.mubr.bf16.mxu0 0
    %1044 = vmatmul.mubr.bf16.gmra.mrb[0].mxu0 %v1009
    %v1045 = vpop.f32.mrb[0].mxu0
    %v1046 = vadd.f32 0.0, %v1045
    %v1047 = vpop.f32.mrb[0].mxu0
    %v1048 = vpop.f32.mrb[0].mxu0
    %v1049 = vadd.f32 0.0, %v1048
    %v1050 = vpop.f32.mrb[0].mxu0
    %1051 = vdwg.mxu0
    %1054 = vrot.lane.b32.xlu0 %v1046, 32
    %v1055 = vpop.permute.xlu0 %1054
    %1056 = vrot.lane.b32.xlu0 %v1049, 32
    %v1057 = vpop.permute.xlu0 %1056
    %v1060 = vsel %vm813, %v924, %v1055
    %v1061 = vsel %vm813, %v927, %v1057
    %v1062 = vld [vmem:[%s11] sm:$0xf]
    %v1063 = vld [vmem:[%s11 + $0x4] sm:$0xf]
    %v1064 = vld [vmem:[%s11 + $0x8] sm:$0xf]
    %v1065 = vld [vmem:[%s11 + $0xc] sm:$0xf]
    %v1066 = vld [vmem:[%s11 + $0x10] sm:$0xf]
    %v1067 = vld [vmem:[%s11 + $0x14] sm:$0xf]
    %v1068 = vld [vmem:[%s11 + $0x18] sm:$0xf]
    %v1069 = vld [vmem:[%s11 + $0x1c] sm:$0xf]
    %v1070 = vpack.c.bf16 %v1061, %v1060
    %v1079 = vunpack.c.l.b16 %v1062
    %v1080 = vunpack.c.l.b16 %v1063
    %v1081 = vunpack.c.l.b16 %v1064
    %v1082 = vunpack.c.l.b16 %v1065
    %v1083 = vunpack.c.l.b16 %v1066
    %v1084 = vunpack.c.l.b16 %v1067
    %v1085 = vunpack.c.l.b16 %v1068
    %v1086 = vunpack.c.l.b16 %v1069
    %v1087 = vpack.c.b16 %v1080, %v1079
    %v1088 = vpack.c.b16 %v1082, %v1081
    %v1089 = vpack.c.b16 %v1084, %v1083
    %v1090 = vpack.c.b16 %v1086, %v1085
    %v1096 = vsel %vm612, %v1070, 0
    %1098 = vmatprep.subr.bf16.mxu0 0
    %1099 = vmatpush1.bf16.msra.mxu0 %v1087
    %1100 = vmatprep.subr.bf16.mxu0 0
    %1101 = vmatpush1.bf16.msra.mxu0 %v1088
    %1102 = vmatprep.subr.bf16.mxu0 0
    %1103 = vmatpush1.bf16.msra.mxu0 %v1089
    %1104 = vmatprep.subr.bf16.mxu0 0
    %1105 = vmatpush1.bf16.msra.mxu0 %v1090
    %1106 = vmatprep.subr.bf16.mxu0 0
    %1107 = vmatpush1.bf16.msra.mxu0 0
    %1108 = vmatprep.subr.bf16.mxu0 0
    %1109 = vmatpush1.bf16.msra.mxu0 0
    %1110 = vmatprep.subr.bf16.mxu0 0
    %1111 = vmatpush1.bf16.msra.mxu0 0
    %1112 = vmatprep.subr.bf16.mxu0 0
    %1113 = vmatpush1.bf16.msra.mxu0 0
    %1114 = vmatprep.subr.bf16.mxu0 0
    %1115 = vmatpush1.bf16.msra.mxu0 0
    %1116 = vmatprep.subr.bf16.mxu0 0
    %1117 = vmatpush1.bf16.msra.mxu0 0
    %1118 = vmatprep.subr.bf16.mxu0 0
    %1119 = vmatpush1.bf16.msra.mxu0 0
    %1120 = vmatprep.subr.bf16.mxu0 0
    %1121 = vmatpush1.bf16.msra.mxu0 0
    %1122 = vmatprep.subr.bf16.mxu0 0
    %1123 = vmatpush1.bf16.msra.mxu0 0
    %1124 = vmatprep.subr.bf16.mxu0 0
    %1125 = vmatpush1.bf16.msra.mxu0 0
    %1126 = vmatprep.subr.bf16.mxu0 0
    %1127 = vmatpush1.bf16.msra.mxu0 0
    %1128 = vmatprep.subr.bf16.mxu0 0
    %1129 = vmatpush1.bf16.msra.mxu0 0
    %1130 = vmatprep.mubr.bf16.mxu0 0
    %1131 = vmatmul.mubr.bf16.gmra.mrb[0].mxu0 %v1096
    %v1132 = vpop.f32.mrb[0].mxu0
    %v1133 = vadd.f32 0.0, %v1132
    %v1134 = vpop.f32.mrb[0].mxu0
    %v1135 = vpop.f32.mrb[0].mxu0
    %v1136 = vadd.f32 0.0, %v1135
    %v1137 = vpop.f32.mrb[0].mxu0
    %1138 = vdwg.mxu0
    %v1139 = vadd.f32 %v654, %v1133
    %v1140 = vadd.f32 %v655, %v1136
    %v1141 = vld [vmem:[%s12] sm:$0x1]
    %v1143 = vlaneseq
    %v1144 = vshrl.u32 %v1143, 7
    %v1145 = vsub.s32 0, %v1144
    %v1146 = vrot.slane %v1141, %v1145
    %v1148 = vadd.f32 %v1139, %v1146
    %v1149 = vadd.f32 %v1140, %v1146
    %v1150 = vld [vmem:[%s13] sm:$0x1]
    %v1151 = vld [vmem:[%s14] sm:$0x1]
    %v1152 = vsel %vm612, %v1148, 0.0
    %1153 = vadd.xlane.f32.xlu0 %v1152
    %v1154 = vpop.xlane.xlu0 %1153
    %v1155 = vsel %vm612, %v1149, 0.0
    %1156 = vadd.xlane.f32.xlu0 %v1155
    %v1157 = vpop.xlane.xlu0 %1156
    %v1158 = vmul.f32 %v1154, %v619
    %v1159 = vmul.f32 %v1157, %v619
    %v1160 = vsub.f32 %v1148, %v1158
    %v1161 = vsub.f32 %v1149, %v1159
    %v1162 = vmul.f32 %v1160, %v1160
    %v1163 = vmul.f32 %v1161, %v1161
    %v1164 = vsel %vm612, %v1162, 0.0
    %1165 = vadd.xlane.f32.xlu0 %v1164
    %v1166 = vpop.xlane.xlu0 %1165
    %v1167 = vsel %vm612, %v1163, 0.0
    %1168 = vadd.xlane.f32.xlu0 %v1167
    %v1169 = vpop.xlane.xlu0 %1168
    %v1170 = vmul.f32 %v1166, %v619
    %v1171 = vmul.f32 %v1169, %v619
    %v1172 = vadd.f32 %v1170, 1e-05
    %v1173 = vadd.f32 %v1171, 1e-05
    %v1174 = vrsqrt.pop %v1172
    %v1175 = vrsqrt.pop %v1173
    %v1176 = vmul.f32 %v1160, %v1174
    %v1177 = vmul.f32 %v1161, %v1175
    %v1179 = vlaneseq
    %v1180 = vshrl.u32 %v1179, 7
    %v1181 = vsub.s32 0, %v1180
    %v1182 = vrot.slane %v1150, %v1181
    %v1184 = vmul.f32 %v1176, %v1182
    %v1185 = vmul.f32 %v1177, %v1182
    %v1187 = vlaneseq
    %v1188 = vshrl.u32 %v1187, 7
    %v1189 = vsub.s32 0, %v1188
    %v1190 = vrot.slane %v1151, %v1189
    %v1192 = vadd.f32 %v1184, %v1190
    %v1193 = vadd.f32 %v1185, %v1190
    %v1194 = vld [vmem:[%s15] sm:$0xf]
    %v1195 = vld [vmem:[%s15 + $0x4] sm:$0xf]
    %v1196 = vld [vmem:[%s15 + $0x8] sm:$0xf]
    %v1197 = vld [vmem:[%s15 + $0xc] sm:$0xf]
    %v1198 = vld [vmem:[%s15 + $0x10] sm:$0xf]
    %v1199 = vld [vmem:[%s15 + $0x14] sm:$0xf]
    %v1200 = vld [vmem:[%s15 + $0x18] sm:$0xf]
    %v1201 = vld [vmem:[%s15 + $0x1c] sm:$0xf]
    %v1202 = vpack.c.bf16 %v1193, %v1192
    %v1203 = vld [vmem:[%s16] sm:$0x1]
    %v1205 = vlaneseq
    %v1206 = vshrl.u32 %v1205, 7
    %v1207 = vsub.s32 0, %v1206
    %v1208 = vrot.slane %v1203, %v1207
    %v1218 = vunpack.c.l.b16 %v1194
    %v1219 = vunpack.c.l.b16 %v1195
    %v1220 = vunpack.c.l.b16 %v1196
    %v1221 = vunpack.c.l.b16 %v1197
    %v1222 = vunpack.c.l.b16 %v1198
    %v1223 = vunpack.c.l.b16 %v1199
    %v1224 = vunpack.c.l.b16 %v1200
    %v1225 = vunpack.c.l.b16 %v1201
    %v1226 = vpack.c.b16 %v1219, %v1218
    %v1227 = vpack.c.b16 %v1221, %v1220
    %v1228 = vpack.c.b16 %v1223, %v1222
    %v1229 = vpack.c.b16 %v1225, %v1224
    %v1235 = vsel %vm612, %v1202, 0
    %1237 = vmatprep.subr.bf16.mxu0 0
    %1238 = vmatpush1.bf16.msra.mxu0 %v1226
    %1239 = vmatprep.subr.bf16.mxu0 0
    %1240 = vmatpush1.bf16.msra.mxu0 %v1227
    %1241 = vmatprep.subr.bf16.mxu0 0
    %1242 = vmatpush1.bf16.msra.mxu0 %v1228
    %1243 = vmatprep.subr.bf16.mxu0 0
    %1244 = vmatpush1.bf16.msra.mxu0 %v1229
    %1245 = vmatprep.subr.bf16.mxu0 0
    %1246 = vmatpush1.bf16.msra.mxu0 0
    %1247 = vmatprep.subr.bf16.mxu0 0
    %1248 = vmatpush1.bf16.msra.mxu0 0
    %1249 = vmatprep.subr.bf16.mxu0 0
    %1250 = vmatpush1.bf16.msra.mxu0 0
    %1251 = vmatprep.subr.bf16.mxu0 0
    %1252 = vmatpush1.bf16.msra.mxu0 0
    %1253 = vmatprep.subr.bf16.mxu0 0
    %1254 = vmatpush1.bf16.msra.mxu0 0
    %1255 = vmatprep.subr.bf16.mxu0 0
    %1256 = vmatpush1.bf16.msra.mxu0 0
    %1257 = vmatprep.subr.bf16.mxu0 0
    %1258 = vmatpush1.bf16.msra.mxu0 0
    %1259 = vmatprep.subr.bf16.mxu0 0
    %1260 = vmatpush1.bf16.msra.mxu0 0
    %1261 = vmatprep.subr.bf16.mxu0 0
    %1262 = vmatpush1.bf16.msra.mxu0 0
    %1263 = vmatprep.subr.bf16.mxu0 0
    %1264 = vmatpush1.bf16.msra.mxu0 0
    %1265 = vmatprep.subr.bf16.mxu0 0
    %1266 = vmatpush1.bf16.msra.mxu0 0
    %1267 = vmatprep.subr.bf16.mxu0 0
    %1268 = vmatpush1.bf16.msra.mxu0 0
    %1269 = vmatprep.mubr.bf16.mxu0 0
    %1270 = vmatmul.mubr.bf16.gmra.mrb[0].mxu0 %v1235
    %v1271 = vpop.f32.mrb[0].mxu0
    %v1272 = vadd.f32 %v1208, %v1271
    %v1273 = vpop.f32.mrb[0].mxu0
    %v1274 = vpop.f32.mrb[0].mxu0
    %v1275 = vadd.f32 %v1208, %v1274
    %v1276 = vpop.f32.mrb[0].mxu0
    %1277 = vdwg.mxu0
    %v1278 = vmul.f32 %v1272, 1.702
    %v1279 = vmul.f32 %v1275, 1.702
    %v1280 = vxor.u32 %v1278, 2147483648
    %v1281 = vxor.u32 %v1279, 2147483648
    %v1282 = vmul.f32 %v1280, 1.442695
    %v1283 = vpow.pop %v1282
    %v1284 = vmul.f32 %v1281, 1.442695
    %v1285 = vpow.pop %v1284
    %v1286 = vadd.f32 %v1283, 1.0
    %v1287 = vadd.f32 %v1285, 1.0
    %v1288 = vrcp.pop %v1286
    %v1289 = vmul.f32 1.0, %v1288
    %v1290 = vrcp.pop %v1287
    %v1291 = vmul.f32 1.0, %v1290
    %v1292 = vmul.f32 %v1272, %v1289
    %v1293 = vmul.f32 %v1275, %v1291
    %v1294 = vld [vmem:[%s17] sm:$0xf]
    %v1295 = vld [vmem:[%s17 + $0x4] sm:$0xf]
    %v1296 = vld [vmem:[%s17 + $0x8] sm:$0xf]
    %v1297 = vld [vmem:[%s17 + $0xc] sm:$0xf]
    %v1298 = vld [vmem:[%s17 + $0x10] sm:$0xf]
    %v1299 = vld [vmem:[%s17 + $0x14] sm:$0xf]
    %v1300 = vld [vmem:[%s17 + $0x18] sm:$0xf]
    %v1301 = vld [vmem:[%s17 + $0x1c] sm:$0xf]
    %v1302 = vld [vmem:[%s17 + $0x20] sm:$0xf]
    %v1303 = vld [vmem:[%s17 + $0x24] sm:$0xf]
    %v1304 = vld [vmem:[%s17 + $0x28] sm:$0xf]
    %v1305 = vld [vmem:[%s17 + $0x2c] sm:$0xf]
    %v1306 = vld [vmem:[%s17 + $0x30] sm:$0xf]
    %v1307 = vld [vmem:[%s17 + $0x34] sm:$0xf]
    %v1308 = vld [vmem:[%s17 + $0x38] sm:$0xf]
    %v1309 = vld [vmem:[%s17 + $0x3c] sm:$0xf]
    %v1310 = vpack.c.bf16 %v1293, %v1292
    %v1327 = vunpack.c.l.b16 %v1294
    %v1328 = vunpack.c.l.b16 %v1295
    %v1329 = vunpack.c.l.b16 %v1296
    %v1330 = vunpack.c.l.b16 %v1297
    %v1331 = vunpack.c.l.b16 %v1298
    %v1332 = vunpack.c.l.b16 %v1299
    %v1333 = vunpack.c.l.b16 %v1300
    %v1334 = vunpack.c.l.b16 %v1301
    %v1335 = vunpack.c.l.b16 %v1302
    %v1336 = vunpack.c.l.b16 %v1303
    %v1337 = vunpack.c.l.b16 %v1304
    %v1338 = vunpack.c.l.b16 %v1305
    %v1339 = vunpack.c.l.b16 %v1306
    %v1340 = vunpack.c.l.b16 %v1307
    %v1341 = vunpack.c.l.b16 %v1308
    %v1342 = vunpack.c.l.b16 %v1309
    %v1343 = vpack.c.b16 %v1328, %v1327
    %v1344 = vpack.c.b16 %v1330, %v1329
    %v1345 = vpack.c.b16 %v1332, %v1331
    %v1346 = vpack.c.b16 %v1334, %v1333
    %v1347 = vpack.c.b16 %v1336, %v1335
    %v1348 = vpack.c.b16 %v1338, %v1337
    %v1349 = vpack.c.b16 %v1340, %v1339
    %v1350 = vpack.c.b16 %v1342, %v1341
    %1359 = vmatprep.subr.bf16.mxu0 0
    %1360 = vmatpush1.bf16.msra.mxu0 %v1343
    %1361 = vmatprep.subr.bf16.mxu0 0
    %1362 = vmatpush1.bf16.msra.mxu0 %v1344
    %1363 = vmatprep.subr.bf16.mxu0 0
    %1364 = vmatpush1.bf16.msra.mxu0 %v1345
    %1365 = vmatprep.subr.bf16.mxu0 0
    %1366 = vmatpush1.bf16.msra.mxu0 %v1346
    %1367 = vmatprep.subr.bf16.mxu0 0
    %1368 = vmatpush1.bf16.msra.mxu0 %v1347
    %1369 = vmatprep.subr.bf16.mxu0 0
    %1370 = vmatpush1.bf16.msra.mxu0 %v1348
    %1371 = vmatprep.subr.bf16.mxu0 0
    %1372 = vmatpush1.bf16.msra.mxu0 %v1349
    %1373 = vmatprep.subr.bf16.mxu0 0
    %1374 = vmatpush1.bf16.msra.mxu0 %v1350
    %1375 = vmatprep.subr.bf16.mxu0 0
    %1376 = vmatpush1.bf16.msra.mxu0 0
    %1377 = vmatprep.subr.bf16.mxu0 0
    %1378 = vmatpush1.bf16.msra.mxu0 0
    %1379 = vmatprep.subr.bf16.mxu0 0
    %1380 = vmatpush1.bf16.msra.mxu0 0
    %1381 = vmatprep.subr.bf16.mxu0 0
    %1382 = vmatpush1.bf16.msra.mxu0 0
    %1383 = vmatprep.subr.bf16.mxu0 0
    %1384 = vmatpush1.bf16.msra.mxu0 0
    %1385 = vmatprep.subr.bf16.mxu0 0
    %1386 = vmatpush1.bf16.msra.mxu0 0
    %1387 = vmatprep.subr.bf16.mxu0 0
    %1388 = vmatpush1.bf16.msra.mxu0 0
    %1389 = vmatprep.subr.bf16.mxu0 0
    %1390 = vmatpush1.bf16.msra.mxu0 0
    %1391 = vmatprep.mubr.bf16.mxu0 0
    %1392 = vmatmul.mubr.bf16.gmra.mrb[0].mxu0 %v1310
    %v1393 = vpop.f32.mrb[0].mxu0
    %v1394 = vadd.f32 0.0, %v1393
    %v1395 = vpop.f32.mrb[0].mxu0
    %v1396 = vpop.f32.mrb[0].mxu0
    %v1397 = vadd.f32 0.0, %v1396
    %v1398 = vpop.f32.mrb[0].mxu0
    %1399 = vdwg.mxu0
    %v1400 = vadd.f32 %v1148, %v1394
    %v1401 = vadd.f32 %v1149, %v1397
    %v1402 = vld [vmem:[%s18] sm:$0x1]
    %v1404 = vlaneseq
    %v1405 = vshrl.u32 %v1404, 7
    %v1406 = vsub.s32 0, %v1405
    %v1407 = vrot.slane %v1402, %v1406
    %v1409 = vadd.f32 %v1400, %v1407
    %v1410 = vadd.f32 %v1401, %v1407
    %s1411 = scalar_lea.vmem %s7, 1
    %v1412 = vld [vmem:[%s1411] sm:$0x1]
    %s1413 = scalar_lea.vmem %s8, 1
    %v1414 = vld [vmem:[%s1413] sm:$0x1]
    %v1415 = vsel %vm612, %v1409, 0.0
    %1416 = vadd.xlane.f32.xlu0 %v1415
    %v1417 = vpop.xlane.xlu0 %1416
    %v1418 = vsel %vm612, %v1410, 0.0
    %1419 = vadd.xlane.f32.xlu0 %v1418
    %v1420 = vpop.xlane.xlu0 %1419
    %v1421 = vmul.f32 %v1417, %v619
    %v1422 = vmul.f32 %v1420, %v619
    %v1423 = vsub.f32 %v1409, %v1421
    %v1424 = vsub.f32 %v1410, %v1422
    %v1425 = vmul.f32 %v1423, %v1423
    %v1426 = vmul.f32 %v1424, %v1424
    %v1427 = vsel %vm612, %v1425, 0.0
    %1428 = vadd.xlane.f32.xlu0 %v1427
    %v1429 = vpop.xlane.xlu0 %1428
    %v1430 = vsel %vm612, %v1426, 0.0
    %1431 = vadd.xlane.f32.xlu0 %v1430
    %v1432 = vpop.xlane.xlu0 %1431
    %v1433 = vmul.f32 %v1429, %v619
    %v1434 = vmul.f32 %v1432, %v619
    %v1435 = vadd.f32 %v1433, 1e-05
    %v1436 = vadd.f32 %v1434, 1e-05
    %v1437 = vrsqrt.pop %v1435
    %v1438 = vrsqrt.pop %v1436
    %v1439 = vmul.f32 %v1423, %v1437
    %v1440 = vmul.f32 %v1424, %v1438
    %v1442 = vlaneseq
    %v1443 = vshrl.u32 %v1442, 7
    %v1444 = vsub.s32 0, %v1443
    %v1445 = vrot.slane %v1412, %v1444
    %v1447 = vmul.f32 %v1439, %v1445
    %v1448 = vmul.f32 %v1440, %v1445
    %v1450 = vlaneseq
    %v1451 = vshrl.u32 %v1450, 7
    %v1452 = vsub.s32 0, %v1451
    %v1453 = vrot.slane %v1414, %v1452
    %v1455 = vadd.f32 %v1447, %v1453
    %v1456 = vadd.f32 %v1448, %v1453
    %s1457 = scalar_lea.vmem %s9, 64
    %v1458 = vld [vmem:[%s1457] sm:$0xff]
    %v1459 = vld [vmem:[%s1457 + $0x8] sm:$0xff]
    %v1460 = vld [vmem:[%s1457 + $0x10] sm:$0xff]
    %v1461 = vld [vmem:[%s1457 + $0x18] sm:$0xff]
    %v1462 = vld [vmem:[%s1457 + $0x20] sm:$0xff]
    %v1463 = vld [vmem:[%s1457 + $0x28] sm:$0xff]
    %v1464 = vld [vmem:[%s1457 + $0x30] sm:$0xff]
    %v1465 = vld [vmem:[%s1457 + $0x38] sm:$0xff]
    %v1466 = vpack.c.bf16 %v1456, %v1455
    %s1467 = scalar_lea.vmem %s10, 2
    %v1468 = vld [vmem:[%s1467] sm:$0x3]
    %v1470 = vlaneseq
    %v1471 = vshrl.u32 %v1470, 7
    %v1472 = vsub.s32 0, %v1471
    %v1473 = vrot.slane %v1468, %v1472
    %v1474 = vlaneseq
    %v1475 = vshrl.u32 %v1474, 7
    %v1476 = vsub.s32 1, %v1475
    %v1477 = vrot.slane %v1468, %v1476
    %v1488 = vunpack.c.l.b16 %v1458
    %v1489 = vunpack.c.h.b16 %v1458
    %v1490 = vunpack.c.l.b16 %v1459
    %v1491 = vunpack.c.h.b16 %v1459
    %v1492 = vunpack.c.l.b16 %v1460
    %v1493 = vunpack.c.h.b16 %v1460
    %v1494 = vunpack.c.l.b16 %v1461
    %v1495 = vunpack.c.h.b16 %v1461
    %v1496 = vunpack.c.l.b16 %v1462
    %v1497 = vunpack.c.h.b16 %v1462
    %v1498 = vunpack.c.l.b16 %v1463
    %v1499 = vunpack.c.h.b16 %v1463
    %v1500 = vunpack.c.l.b16 %v1464
    %v1501 = vunpack.c.h.b16 %v1464
    %v1502 = vunpack.c.l.b16 %v1465
    %v1503 = vunpack.c.h.b16 %v1465
    %v1504 = vpack.c.b16 %v1490, %v1488
    %v1505 = vpack.c.b16 %v1491, %v1489
    %v1506 = vpack.c.b16 %v1494, %v1492
    %v1507 = vpack.c.b16 %v1495, %v1493
    %v1508 = vpack.c.b16 %v1498, %v1496
    %v1509 = vpack.c.b16 %v1499, %v1497
    %v1510 = vpack.c.b16 %v1502, %v1500
    %v1511 = vpack.c.b16 %v1503, %v1501
    %v1521 = vsel %vm612, %v1466, 0
    %1523 = vmatprep.subr.bf16.mxu0 %v1505
    %1524 = vmatpush1.bf16.msra.mxu0 %v1504
    %1525 = vmatprep.subr.bf16.mxu0 %v1507
    %1526 = vmatpush1.bf16.msra.mxu0 %v1506
    %1527 = vmatprep.subr.bf16.mxu0 %v1509
    %1528 = vmatpush1.bf16.msra.mxu0 %v1508
    %1529 = vmatprep.subr.bf16.mxu0 %v1511
    %1530 = vmatpush1.bf16.msra.mxu0 %v1510
    %1531 = vmatprep.subr.bf16.mxu0 0
    %1532 = vmatpush1.bf16.msra.mxu0 0
    %1533 = vmatprep.subr.bf16.mxu0 0
    %1534 = vmatpush1.bf16.msra.mxu0 0
    %1535 = vmatprep.subr.bf16.mxu0 0
    %1536 = vmatpush1.bf16.msra.mxu0 0
    %1537 = vmatprep.subr.bf16.mxu0 0
    %1538 = vmatpush1.bf16.msra.mxu0 0
    %1539 = vmatprep.subr.bf16.mxu0 0
    %1540 = vmatpush1.bf16.msra.mxu0 0
    %1541 = vmatprep.subr.bf16.mxu0 0
    %1542 = vmatpush1.bf16.msra.mxu0 0
    %1543 = vmatprep.subr.bf16.mxu0 0
    %1544 = vmatpush1.bf16.msra.mxu0 0
    %1545 = vmatprep.subr.bf16.mxu0 0
    %1546 = vmatpush1.bf16.msra.mxu0 0
    %1547 = vmatprep.subr.bf16.mxu0 0
    %1548 = vmatpush1.bf16.msra.mxu0 0
    %1549 = vmatprep.subr.bf16.mxu0 0
    %1550 = vmatpush1.bf16.msra.mxu0 0
    %1551 = vmatprep.subr.bf16.mxu0 0
    %1552 = vmatpush1.bf16.msra.mxu0 0
    %1553 = vmatprep.subr.bf16.mxu0 0
    %1554 = vmatpush1.bf16.msra.mxu0 0
    %1555 = vmatprep.mubr.bf16.mxu0 0
    %1556 = vmatmul.mubr.bf16.gmra.mrb[0].mxu0 %v1521
    %v1557 = vpop.f32.mrb[0].mxu0
    %v1558 = vadd.f32 %v1473, %v1557
    %v1559 = vpop.f32.mrb[0].mxu0
    %v1560 = vadd.f32 %v1477, %v1559
    %v1561 = vpop.f32.mrb[0].mxu0
    %v1562 = vadd.f32 %v1473, %v1561
    %v1563 = vpop.f32.mrb[0].mxu0
    %v1564 = vadd.f32 %v1477, %v1563
    %1565 = vdwg.mxu0
    %v1566 = vpack.c.bf16 %v1562, %v1558
    %1568 = vrot.lane.b32.xlu0 %v1566, 64
    %v1569 = vpop.permute.xlu0 %1568
    %v1571 = vsel %vm813, %v1566, 0
    %v1574 = vsel %vm813, %v1569, 0
    %1576 = vmatprep.subr.bf16.mxu0 0
    %1577 = vmatpush1.bf16.xpose.msra.mxu0 %v1574
    %1578 = vmatprep.subr.bf16.mxu0 0
    %1579 = vmatpush1.bf16.xpose.msra.mxu0 0
    %1580 = vmatprep.subr.bf16.mxu0 0
    %1581 = vmatpush1.bf16.xpose.msra.mxu0 0
    %1582 = vmatprep.subr.bf16.mxu0 0
    %1583 = vmatpush1.bf16.xpose.msra.mxu0 0
    %1584 = vmatprep.subr.bf16.mxu0 0
    %1585 = vmatpush1.bf16.xpose.msra.mxu0 0
    %1586 = vmatprep.subr.bf16.mxu0 0
    %1587 = vmatpush1.bf16.xpose.msra.mxu0 0
    %1588 = vmatprep.subr.bf16.mxu0 0
    %1589 = vmatpush1.bf16.xpose.msra.mxu0 0
    %1590 = vmatprep.subr.bf16.mxu0 0
    %1591 = vmatpush1.bf16.xpose.msra.mxu0 0
    %1592 = vmatprep.subr.bf16.mxu0 0
    %1593 = vmatpush1.bf16.xpose.msra.mxu0 0
    %1594 = vmatprep.subr.bf16.mxu0 0
    %1595 = vmatpush1.bf16.xpose.msra.mxu0 0
    %1596 = vmatprep.subr.bf16.mxu0 0
    %1597 = vmatpush1.bf16.xpose.msra.mxu0 0
    %1598 = vmatprep.subr.bf16.mxu0 0
    %1599 = vmatpush1.bf16.xpose.msra.mxu0 0
    %1600 = vmatprep.subr.bf16.mxu0 0
    %1601 = vmatpush1.bf16.xpose.msra.mxu0 0
    %1602 = vmatprep.subr.bf16.mxu0 0
    %1603 = vmatpush1.bf16.xpose.msra.mxu0 0
    %1604 = vmatprep.subr.bf16.mxu0 0
    %1605 = vmatpush1.bf16.xpose.msra.mxu0 0
    %1606 = vmatprep.subr.bf16.mxu0 0
    %1607 = vmatpush1.bf16.xpose.msra.mxu0 0
    %1608 = vmatprep.mubr.bf16.mxu0 0
    %1609 = vmatmul.mubr.bf16.gmra.mrb[0].mxu0 %v1571
    %v1610 = vpop.f32.mrb[0].mxu0
    %v1611 = vadd.f32 %v656, %v1610
    %v1612 = vpop.f32.mrb[0].mxu0
    %v1613 = vpop.f32.mrb[0].mxu0
    %v1614 = vadd.f32 %v657, %v1613
    %v1615 = vpop.f32.mrb[0].mxu0
    %1616 = vdwg.mxu0
    %v1617 = vsel %vm861, %v1611, -inf
    %1618 = vmax.xlane.f32.xlu0 %v1617
    %v1619 = vpop.xlane.xlu0 %1618
    %v1620 = vsel %vm861, %v1614, -inf
    %1621 = vmax.xlane.f32.xlu0 %v1620
    %v1622 = vpop.xlane.xlu0 %1621
    %v1623 = vsub.f32 %v1611, %v1619
    %v1624 = vsub.f32 %v1614, %v1622
    %v1625 = vmul.f32 %v1623, 1.442695
    %v1626 = vpow.pop %v1625
    %v1627 = vmul.f32 %v1624, 1.442695
    %v1628 = vpow.pop %v1627
    %v1629 = vsel %vm861, %v1626, 0.0
    %1630 = vadd.xlane.f32.xlu0 %v1629
    %v1631 = vpop.xlane.xlu0 %1630
    %v1632 = vsel %vm861, %v1628, 0.0
    %1633 = vadd.xlane.f32.xlu0 %v1632
    %v1634 = vpop.xlane.xlu0 %1633
    %v1635 = vrcp.pop %v1631
    %v1636 = vmul.f32 %v1626, %v1635
    %v1637 = vrcp.pop %v1634
    %v1638 = vmul.f32 %v1628, %v1637
    %v1639 = vpack.c.bf16 %v1638, %v1636
    %v1640 = vpack.c.bf16 %v1564, %v1560
    %v1642 = vsel %vm861, %v1639, 0
    %1644 = vmatprep.subr.bf16.mxu0 0
    %1645 = vmatpush1.bf16.msra.mxu0 %v1640
    %1646 = vmatprep.subr.bf16.mxu0 0
    %1647 = vmatpush1.bf16.msra.mxu0 0
    %1648 = vmatprep.subr.bf16.mxu0 0
    %1649 = vmatpush1.bf16.msra.mxu0 0
    %1650 = vmatprep.subr.bf16.mxu0 0
    %1651 = vmatpush1.bf16.msra.mxu0 0
    %1652 = vmatprep.subr.bf16.mxu0 0
    %1653 = vmatpush1.bf16.msra.mxu0 0
    %1654 = vmatprep.subr.bf16.mxu0 0
    %1655 = vmatpush1.bf16.msra.mxu0 0
    %1656 = vmatprep.subr.bf16.mxu0 0
    %1657 = vmatpush1.bf16.msra.mxu0 0
    %1658 = vmatprep.subr.bf16.mxu0 0
    %1659 = vmatpush1.bf16.msra.mxu0 0
    %1660 = vmatprep.subr.bf16.mxu0 0
    %1661 = vmatpush1.bf16.msra.mxu0 0
    %1662 = vmatprep.subr.bf16.mxu0 0
    %1663 = vmatpush1.bf16.msra.mxu0 0
    %1664 = vmatprep.subr.bf16.mxu0 0
    %1665 = vmatpush1.bf16.msra.mxu0 0
    %1666 = vmatprep.subr.bf16.mxu0 0
    %1667 = vmatpush1.bf16.msra.mxu0 0
    %1668 = vmatprep.subr.bf16.mxu0 0
    %1669 = vmatpush1.bf16.msra.mxu0 0
    %1670 = vmatprep.subr.bf16.mxu0 0
    %1671 = vmatpush1.bf16.msra.mxu0 0
    %1672 = vmatprep.subr.bf16.mxu0 0
    %1673 = vmatpush1.bf16.msra.mxu0 0
    %1674 = vmatprep.subr.bf16.mxu0 0
    %1675 = vmatpush1.bf16.msra.mxu0 0
    %1676 = vmatprep.mubr.bf16.mxu0 0
    %1677 = vmatmul.mubr.bf16.gmra.mrb[0].mxu0 %v1642
    %v1678 = vpop.f32.mrb[0].mxu0
    %v1679 = vadd.f32 0.0, %v1678
    %v1680 = vpop.f32.mrb[0].mxu0
    %v1681 = vpop.f32.mrb[0].mxu0
    %v1682 = vadd.f32 0.0, %v1681
    %v1683 = vpop.f32.mrb[0].mxu0
    %1684 = vdwg.mxu0
    %1685 = vrot.lane.b32.xlu0 %v1566, 96
    %v1686 = vpop.permute.xlu0 %1685
    %1687 = vrot.lane.b32.xlu0 %v1566, 32
    %v1688 = vpop.permute.xlu0 %1687
    %v1690 = vsel %vm813, %v1686, 0
    %v1693 = vsel %vm813, %v1688, 0
    %1695 = vmatprep.subr.bf16.mxu0 0
    %1696 = vmatpush1.bf16.xpose.msra.mxu0 %v1693
    %1697 = vmatprep.subr.bf16.mxu0 0
    %1698 = vmatpush1.bf16.xpose.msra.mxu0 0
    %1699 = vmatprep.subr.bf16.mxu0 0
    %1700 = vmatpush1.bf16.xpose.msra.mxu0 0
    %1701 = vmatprep.subr.bf16.mxu0 0
    %1702 = vmatpush1.bf16.xpose.msra.mxu0 0
    %1703 = vmatprep.subr.bf16.mxu0 0
    %1704 = vmatpush1.bf16.xpose.msra.mxu0 0
    %1705 = vmatprep.subr.bf16.mxu0 0
    %1706 = vmatpush1.bf16.xpose.msra.mxu0 0
    %1707 = vmatprep.subr.bf16.mxu0 0
    %1708 = vmatpush1.bf16.xpose.msra.mxu0 0
    %1709 = vmatprep.subr.bf16.mxu0 0
    %1710 = vmatpush1.bf16.xpose.msra.mxu0 0
    %1711 = vmatprep.subr.bf16.mxu0 0
    %1712 = vmatpush1.bf16.xpose.msra.mxu0 0
    %1713 = vmatprep.subr.bf16.mxu0 0
    %1714 = vmatpush1.bf16.xpose.msra.mxu0 0
    %1715 = vmatprep.subr.bf16.mxu0 0
    %1716 = vmatpush1.bf16.xpose.msra.mxu0 0
    %1717 = vmatprep.subr.bf16.mxu0 0
    %1718 = vmatpush1.bf16.xpose.msra.mxu0 0
    %1719 = vmatprep.subr.bf16.mxu0 0
    %1720 = vmatpush1.bf16.xpose.msra.mxu0 0
    %1721 = vmatprep.subr.bf16.mxu0 0
    %1722 = vmatpush1.bf16.xpose.msra.mxu0 0
    %1723 = vmatprep.subr.bf16.mxu0 0
    %1724 = vmatpush1.bf16.xpose.msra.mxu0 0
    %1725 = vmatprep.subr.bf16.mxu0 0
    %1726 = vmatpush1.bf16.xpose.msra.mxu0 0
    %1727 = vmatprep.mubr.bf16.mxu0 0
    %1728 = vmatmul.mubr.bf16.gmra.mrb[0].mxu0 %v1690
    %v1729 = vpop.f32.mrb[0].mxu0
    %v1730 = vadd.f32 %v656, %v1729
    %v1731 = vpop.f32.mrb[0].mxu0
    %v1732 = vpop.f32.mrb[0].mxu0
    %v1733 = vadd.f32 %v657, %v1732
    %v1734 = vpop.f32.mrb[0].mxu0
    %1735 = vdwg.mxu0
    %v1736 = vsel %vm861, %v1730, -inf
    %1737 = vmax.xlane.f32.xlu0 %v1736
    %v1738 = vpop.xlane.xlu0 %1737
    %v1739 = vsel %vm861, %v1733, -inf
    %1740 = vmax.xlane.f32.xlu0 %v1739
    %v1741 = vpop.xlane.xlu0 %1740
    %v1742 = vsub.f32 %v1730, %v1738
    %v1743 = vsub.f32 %v1733, %v1741
    %v1744 = vmul.f32 %v1742, 1.442695
    %v1745 = vpow.pop %v1744
    %v1746 = vmul.f32 %v1743, 1.442695
    %v1747 = vpow.pop %v1746
    %v1748 = vsel %vm861, %v1745, 0.0
    %1749 = vadd.xlane.f32.xlu0 %v1748
    %v1750 = vpop.xlane.xlu0 %1749
    %v1751 = vsel %vm861, %v1747, 0.0
    %1752 = vadd.xlane.f32.xlu0 %v1751
    %v1753 = vpop.xlane.xlu0 %1752
    %v1754 = vrcp.pop %v1750
    %v1755 = vmul.f32 %v1745, %v1754
    %v1756 = vrcp.pop %v1753
    %v1757 = vmul.f32 %v1747, %v1756
    %v1758 = vpack.c.bf16 %v1757, %v1755
    %1760 = vrot.lane.b32.xlu0 %v1640, 96
    %v1761 = vpop.permute.xlu0 %1760
    %v1764 = vsel %vm861, %v1758, 0
    %1766 = vmatprep.subr.bf16.mxu0 0
    %1767 = vmatpush1.bf16.msra.mxu0 %v1761
    %1768 = vmatprep.subr.bf16.mxu0 0
    %1769 = vmatpush1.bf16.msra.mxu0 0
    %1770 = vmatprep.subr.bf16.mxu0 0
    %1771 = vmatpush1.bf16.msra.mxu0 0
    %1772 = vmatprep.subr.bf16.mxu0 0
    %1773 = vmatpush1.bf16.msra.mxu0 0
    %1774 = vmatprep.subr.bf16.mxu0 0
    %1775 = vmatpush1.bf16.msra.mxu0 0
    %1776 = vmatprep.subr.bf16.mxu0 0
    %1777 = vmatpush1.bf16.msra.mxu0 0
    %1778 = vmatprep.subr.bf16.mxu0 0
    %1779 = vmatpush1.bf16.msra.mxu0 0
    %1780 = vmatprep.subr.bf16.mxu0 0
    %1781 = vmatpush1.bf16.msra.mxu0 0
    %1782 = vmatprep.subr.bf16.mxu0 0
    %1783 = vmatpush1.bf16.msra.mxu0 0
    %1784 = vmatprep.subr.bf16.mxu0 0
    %1785 = vmatpush1.bf16.msra.mxu0 0
    %1786 = vmatprep.subr.bf16.mxu0 0
    %1787 = vmatpush1.bf16.msra.mxu0 0
    %1788 = vmatprep.subr.bf16.mxu0 0
    %1789 = vmatpush1.bf16.msra.mxu0 0
    %1790 = vmatprep.subr.bf16.mxu0 0
    %1791 = vmatpush1.bf16.msra.mxu0 0
    %1792 = vmatprep.subr.bf16.mxu0 0
    %1793 = vmatpush1.bf16.msra.mxu0 0
    %1794 = vmatprep.subr.bf16.mxu0 0
    %1795 = vmatpush1.bf16.msra.mxu0 0
    %1796 = vmatprep.subr.bf16.mxu0 0
    %1797 = vmatpush1.bf16.msra.mxu0 0
    %1798 = vmatprep.mubr.bf16.mxu0 0
    %1799 = vmatmul.mubr.bf16.gmra.mrb[0].mxu0 %v1764
    %v1800 = vpop.f32.mrb[0].mxu0
    %v1801 = vadd.f32 0.0, %v1800
    %v1802 = vpop.f32.mrb[0].mxu0
    %v1803 = vpop.f32.mrb[0].mxu0
    %v1804 = vadd.f32 0.0, %v1803
    %v1805 = vpop.f32.mrb[0].mxu0
    %1806 = vdwg.mxu0
    %1809 = vrot.lane.b32.xlu0 %v1801, 32
    %v1810 = vpop.permute.xlu0 %1809
    %1811 = vrot.lane.b32.xlu0 %v1804, 32
    %v1812 = vpop.permute.xlu0 %1811
    %v1815 = vsel %vm813, %v1679, %v1810
    %v1816 = vsel %vm813, %v1682, %v1812
    %s1817 = scalar_lea.vmem %s11, 32
    %v1818 = vld [vmem:[%s1817] sm:$0xf]
    %v1819 = vld [vmem:[%s1817 + $0x4] sm:$0xf]
    %v1820 = vld [vmem:[%s1817 + $0x8] sm:$0xf]
    %v1821 = vld [vmem:[%s1817 + $0xc] sm:$0xf]
    %v1822 = vld [vmem:[%s1817 + $0x10] sm:$0xf]
    %v1823 = vld [vmem:[%s1817 + $0x14] sm:$0xf]
    %v1824 = vld [vmem:[%s1817 + $0x18] sm:$0xf]
    %v1825 = vld [vmem:[%s1817 + $0x1c] sm:$0xf]
    %v1826 = vpack.c.bf16 %v1816, %v1815
    %v1835 = vunpack.c.l.b16 %v1818
    %v1836 = vunpack.c.l.b16 %v1819
    %v1837 = vunpack.c.l.b16 %v1820
    %v1838 = vunpack.c.l.b16 %v1821
    %v1839 = vunpack.c.l.b16 %v1822
    %v1840 = vunpack.c.l.b16 %v1823
    %v1841 = vunpack.c.l.b16 %v1824
    %v1842 = vunpack.c.l.b16 %v1825
    %v1843 = vpack.c.b16 %v1836, %v1835
    %v1844 = vpack.c.b16 %v1838, %v1837
    %v1845 = vpack.c.b16 %v1840, %v1839
    %v1846 = vpack.c.b16 %v1842, %v1841
    %v1852 = vsel %vm612, %v1826, 0
    %1854 = vmatprep.subr.bf16.mxu0 0
    %1855 = vmatpush1.bf16.msra.mxu0 %v1843
    %1856 = vmatprep.subr.bf16.mxu0 0
    %1857 = vmatpush1.bf16.msra.mxu0 %v1844
    %1858 = vmatprep.subr.bf16.mxu0 0
    %1859 = vmatpush1.bf16.msra.mxu0 %v1845
    %1860 = vmatprep.subr.bf16.mxu0 0
    %1861 = vmatpush1.bf16.msra.mxu0 %v1846
    %1862 = vmatprep.subr.bf16.mxu0 0
    %1863 = vmatpush1.bf16.msra.mxu0 0
    %1864 = vmatprep.subr.bf16.mxu0 0
    %1865 = vmatpush1.bf16.msra.mxu0 0
    %1866 = vmatprep.subr.bf16.mxu0 0
    %1867 = vmatpush1.bf16.msra.mxu0 0
    %1868 = vmatprep.subr.bf16.mxu0 0
    %1869 = vmatpush1.bf16.msra.mxu0 0
    %1870 = vmatprep.subr.bf16.mxu0 0
    %1871 = vmatpush1.bf16.msra.mxu0 0
    %1872 = vmatprep.subr.bf16.mxu0 0
    %1873 = vmatpush1.bf16.msra.mxu0 0
    %1874 = vmatprep.subr.bf16.mxu0 0
    %1875 = vmatpush1.bf16.msra.mxu0 0
    %1876 = vmatprep.subr.bf16.mxu0 0
    %1877 = vmatpush1.bf16.msra.mxu0 0
    %1878 = vmatprep.subr.bf16.mxu0 0
    %1879 = vmatpush1.bf16.msra.mxu0 0
    %1880 = vmatprep.subr.bf16.mxu0 0
    %1881 = vmatpush1.bf16.msra.mxu0 0
    %1882 = vmatprep.subr.bf16.mxu0 0
    %1883 = vmatpush1.bf16.msra.mxu0 0
    %1884 = vmatprep.subr.bf16.mxu0 0
    %1885 = vmatpush1.bf16.msra.mxu0 0
    %1886 = vmatprep.mubr.bf16.mxu0 0
    %1887 = vmatmul.mubr.bf16.gmra.mrb[0].mxu0 %v1852
    %v1888 = vpop.f32.mrb[0].mxu0
    %v1889 = vadd.f32 0.0, %v1888
    %v1890 = vpop.f32.mrb[0].mxu0
    %v1891 = vpop.f32.mrb[0].mxu0
    %v1892 = vadd.f32 0.0, %v1891
    %v1893 = vpop.f32.mrb[0].mxu0
    %1894 = vdwg.mxu0
    %v1895 = vadd.f32 %v1409, %v1889
    %v1896 = vadd.f32 %v1410, %v1892
    %s1897 = scalar_lea.vmem %s12, 1
    %v1898 = vld [vmem:[%s1897] sm:$0x1]
    %v1900 = vlaneseq
    %v1901 = vshrl.u32 %v1900, 7
    %v1902 = vsub.s32 0, %v1901
    %v1903 = vrot.slane %v1898, %v1902
    %v1905 = vadd.f32 %v1895, %v1903
    %v1906 = vadd.f32 %v1896, %v1903
    %s1907 = scalar_lea.vmem %s13, 1
    %v1908 = vld [vmem:[%s1907] sm:$0x1]
    %s1909 = scalar_lea.vmem %s14, 1
    %v1910 = vld [vmem:[%s1909] sm:$0x1]
    %v1911 = vsel %vm612, %v1905, 0.0
    %1912 = vadd.xlane.f32.xlu0 %v1911
    %v1913 = vpop.xlane.xlu0 %1912
    %v1914 = vsel %vm612, %v1906, 0.0
    %1915 = vadd.xlane.f32.xlu0 %v1914
    %v1916 = vpop.xlane.xlu0 %1915
    %v1917 = vmul.f32 %v1913, %v619
    %v1918 = vmul.f32 %v1916, %v619
    %v1919 = vsub.f32 %v1905, %v1917
    %v1920 = vsub.f32 %v1906, %v1918
    %v1921 = vmul.f32 %v1919, %v1919
    %v1922 = vmul.f32 %v1920, %v1920
    %v1923 = vsel %vm612, %v1921, 0.0
    %1924 = vadd.xlane.f32.xlu0 %v1923
    %v1925 = vpop.xlane.xlu0 %1924
    %v1926 = vsel %vm612, %v1922, 0.0
    %1927 = vadd.xlane.f32.xlu0 %v1926
    %v1928 = vpop.xlane.xlu0 %1927
    %v1929 = vmul.f32 %v1925, %v619
    %v1930 = vmul.f32 %v1928, %v619
    %v1931 = vadd.f32 %v1929, 1e-05
    %v1932 = vadd.f32 %v1930, 1e-05
    %v1933 = vrsqrt.pop %v1931
    %v1934 = vrsqrt.pop %v1932
    %v1935 = vmul.f32 %v1919, %v1933
    %v1936 = vmul.f32 %v1920, %v1934
    %v1938 = vlaneseq
    %v1939 = vshrl.u32 %v1938, 7
    %v1940 = vsub.s32 0, %v1939
    %v1941 = vrot.slane %v1908, %v1940
    %v1943 = vmul.f32 %v1935, %v1941
    %v1944 = vmul.f32 %v1936, %v1941
    %v1946 = vlaneseq
    %v1947 = vshrl.u32 %v1946, 7
    %v1948 = vsub.s32 0, %v1947
    %v1949 = vrot.slane %v1910, %v1948
    %v1951 = vadd.f32 %v1943, %v1949
    %v1952 = vadd.f32 %v1944, %v1949
    %s1953 = scalar_lea.vmem %s15, 32
    %v1954 = vld [vmem:[%s1953] sm:$0xf]
    %v1955 = vld [vmem:[%s1953 + $0x4] sm:$0xf]
    %v1956 = vld [vmem:[%s1953 + $0x8] sm:$0xf]
    %v1957 = vld [vmem:[%s1953 + $0xc] sm:$0xf]
    %v1958 = vld [vmem:[%s1953 + $0x10] sm:$0xf]
    %v1959 = vld [vmem:[%s1953 + $0x14] sm:$0xf]
    %v1960 = vld [vmem:[%s1953 + $0x18] sm:$0xf]
    %v1961 = vld [vmem:[%s1953 + $0x1c] sm:$0xf]
    %v1962 = vpack.c.bf16 %v1952, %v1951
    %s1963 = scalar_lea.vmem %s16, 1
    %v1964 = vld [vmem:[%s1963] sm:$0x1]
    %v1966 = vlaneseq
    %v1967 = vshrl.u32 %v1966, 7
    %v1968 = vsub.s32 0, %v1967
    %v1969 = vrot.slane %v1964, %v1968
    %v1979 = vunpack.c.l.b16 %v1954
    %v1980 = vunpack.c.l.b16 %v1955
    %v1981 = vunpack.c.l.b16 %v1956
    %v1982 = vunpack.c.l.b16 %v1957
    %v1983 = vunpack.c.l.b16 %v1958
    %v1984 = vunpack.c.l.b16 %v1959
    %v1985 = vunpack.c.l.b16 %v1960
    %v1986 = vunpack.c.l.b16 %v1961
    %v1987 = vpack.c.b16 %v1980, %v1979
    %v1988 = vpack.c.b16 %v1982, %v1981
    %v1989 = vpack.c.b16 %v1984, %v1983
    %v1990 = vpack.c.b16 %v1986, %v1985
    %v1996 = vsel %vm612, %v1962, 0
    %1998 = vmatprep.subr.bf16.mxu0 0
    %1999 = vmatpush1.bf16.msra.mxu0 %v1987
    %2000 = vmatprep.subr.bf16.mxu0 0
    %2001 = vmatpush1.bf16.msra.mxu0 %v1988
    %2002 = vmatprep.subr.bf16.mxu0 0
    %2003 = vmatpush1.bf16.msra.mxu0 %v1989
    %2004 = vmatprep.subr.bf16.mxu0 0
    %2005 = vmatpush1.bf16.msra.mxu0 %v1990
    %2006 = vmatprep.subr.bf16.mxu0 0
    %2007 = vmatpush1.bf16.msra.mxu0 0
    %2008 = vmatprep.subr.bf16.mxu0 0
    %2009 = vmatpush1.bf16.msra.mxu0 0
    %2010 = vmatprep.subr.bf16.mxu0 0
    %2011 = vmatpush1.bf16.msra.mxu0 0
    %2012 = vmatprep.subr.bf16.mxu0 0
    %2013 = vmatpush1.bf16.msra.mxu0 0
    %2014 = vmatprep.subr.bf16.mxu0 0
    %2015 = vmatpush1.bf16.msra.mxu0 0
    %2016 = vmatprep.subr.bf16.mxu0 0
    %2017 = vmatpush1.bf16.msra.mxu0 0
    %2018 = vmatprep.subr.bf16.mxu0 0
    %2019 = vmatpush1.bf16.msra.mxu0 0
    %2020 = vmatprep.subr.bf16.mxu0 0
    %2021 = vmatpush1.bf16.msra.mxu0 0
    %2022 = vmatprep.subr.bf16.mxu0 0
    %2023 = vmatpush1.bf16.msra.mxu0 0
    %2024 = vmatprep.subr.bf16.mxu0 0
    %2025 = vmatpush1.bf16.msra.mxu0 0
    %2026 = vmatprep.subr.bf16.mxu0 0
    %2027 = vmatpush1.bf16.msra.mxu0 0
    %2028 = vmatprep.subr.bf16.mxu0 0
    %2029 = vmatpush1.bf16.msra.mxu0 0
    %2030 = vmatprep.mubr.bf16.mxu0 0
    %2031 = vmatmul.mubr.bf16.gmra.mrb[0].mxu0 %v1996
    %v2032 = vpop.f32.mrb[0].mxu0
    %v2033 = vadd.f32 %v1969, %v2032
    %v2034 = vpop.f32.mrb[0].mxu0
    %v2035 = vpop.f32.mrb[0].mxu0
    %v2036 = vadd.f32 %v1969, %v2035
    %v2037 = vpop.f32.mrb[0].mxu0
    %2038 = vdwg.mxu0
    %v2039 = vmul.f32 %v2033, 1.702
    %v2040 = vmul.f32 %v2036, 1.702
    %v2041 = vxor.u32 %v2039, 2147483648
    %v2042 = vxor.u32 %v2040, 2147483648
    %v2043 = vmul.f32 %v2041, 1.442695
    %v2044 = vpow.pop %v2043
    %v2045 = vmul.f32 %v2042, 1.442695
    %v2046 = vpow.pop %v2045
    %v2047 = vadd.f32 %v2044, 1.0
    %v2048 = vadd.f32 %v2046, 1.0
    %v2049 = vrcp.pop %v2047
    %v2050 = vmul.f32 1.0, %v2049
    %v2051 = vrcp.pop %v2048
    %v2052 = vmul.f32 1.0, %v2051
    %v2053 = vmul.f32 %v2033, %v2050
    %v2054 = vmul.f32 %v2036, %v2052
    %s2055 = scalar_lea.vmem %s17, 64
    %v2056 = vld [vmem:[%s2055] sm:$0xf]
    %v2057 = vld [vmem:[%s2055 + $0x4] sm:$0xf]
    %v2058 = vld [vmem:[%s2055 + $0x8] sm:$0xf]
    %v2059 = vld [vmem:[%s2055 + $0xc] sm:$0xf]
    %v2060 = vld [vmem:[%s2055 + $0x10] sm:$0xf]
    %v2061 = vld [vmem:[%s2055 + $0x14] sm:$0xf]
    %v2062 = vld [vmem:[%s2055 + $0x18] sm:$0xf]
    %v2063 = vld [vmem:[%s2055 + $0x1c] sm:$0xf]
    %v2064 = vld [vmem:[%s2055 + $0x20] sm:$0xf]
    %v2065 = vld [vmem:[%s2055 + $0x24] sm:$0xf]
    %v2066 = vld [vmem:[%s2055 + $0x28] sm:$0xf]
    %v2067 = vld [vmem:[%s2055 + $0x2c] sm:$0xf]
    %v2068 = vld [vmem:[%s2055 + $0x30] sm:$0xf]
    %v2069 = vld [vmem:[%s2055 + $0x34] sm:$0xf]
    %v2070 = vld [vmem:[%s2055 + $0x38] sm:$0xf]
    %v2071 = vld [vmem:[%s2055 + $0x3c] sm:$0xf]
    %v2072 = vpack.c.bf16 %v2054, %v2053
    %v2089 = vunpack.c.l.b16 %v2056
    %v2090 = vunpack.c.l.b16 %v2057
    %v2091 = vunpack.c.l.b16 %v2058
    %v2092 = vunpack.c.l.b16 %v2059
    %v2093 = vunpack.c.l.b16 %v2060
    %v2094 = vunpack.c.l.b16 %v2061
    %v2095 = vunpack.c.l.b16 %v2062
    %v2096 = vunpack.c.l.b16 %v2063
    %v2097 = vunpack.c.l.b16 %v2064
    %v2098 = vunpack.c.l.b16 %v2065
    %v2099 = vunpack.c.l.b16 %v2066
    %v2100 = vunpack.c.l.b16 %v2067
    %v2101 = vunpack.c.l.b16 %v2068
    %v2102 = vunpack.c.l.b16 %v2069
    %v2103 = vunpack.c.l.b16 %v2070
    %v2104 = vunpack.c.l.b16 %v2071
    %v2105 = vpack.c.b16 %v2090, %v2089
    %v2106 = vpack.c.b16 %v2092, %v2091
    %v2107 = vpack.c.b16 %v2094, %v2093
    %v2108 = vpack.c.b16 %v2096, %v2095
    %v2109 = vpack.c.b16 %v2098, %v2097
    %v2110 = vpack.c.b16 %v2100, %v2099
    %v2111 = vpack.c.b16 %v2102, %v2101
    %v2112 = vpack.c.b16 %v2104, %v2103
    %2121 = vmatprep.subr.bf16.mxu0 0
    %2122 = vmatpush1.bf16.msra.mxu0 %v2105
    %2123 = vmatprep.subr.bf16.mxu0 0
    %2124 = vmatpush1.bf16.msra.mxu0 %v2106
    %2125 = vmatprep.subr.bf16.mxu0 0
    %2126 = vmatpush1.bf16.msra.mxu0 %v2107
    %2127 = vmatprep.subr.bf16.mxu0 0
    %2128 = vmatpush1.bf16.msra.mxu0 %v2108
    %2129 = vmatprep.subr.bf16.mxu0 0
    %2130 = vmatpush1.bf16.msra.mxu0 %v2109
    %2131 = vmatprep.subr.bf16.mxu0 0
    %2132 = vmatpush1.bf16.msra.mxu0 %v2110
    %2133 = vmatprep.subr.bf16.mxu0 0
    %2134 = vmatpush1.bf16.msra.mxu0 %v2111
    %2135 = vmatprep.subr.bf16.mxu0 0
    %2136 = vmatpush1.bf16.msra.mxu0 %v2112
    %2137 = vmatprep.subr.bf16.mxu0 0
    %2138 = vmatpush1.bf16.msra.mxu0 0
    %2139 = vmatprep.subr.bf16.mxu0 0
    %2140 = vmatpush1.bf16.msra.mxu0 0
    %2141 = vmatprep.subr.bf16.mxu0 0
    %2142 = vmatpush1.bf16.msra.mxu0 0
    %2143 = vmatprep.subr.bf16.mxu0 0
    %2144 = vmatpush1.bf16.msra.mxu0 0
    %2145 = vmatprep.subr.bf16.mxu0 0
    %2146 = vmatpush1.bf16.msra.mxu0 0
    %2147 = vmatprep.subr.bf16.mxu0 0
    %2148 = vmatpush1.bf16.msra.mxu0 0
    %2149 = vmatprep.subr.bf16.mxu0 0
    %2150 = vmatpush1.bf16.msra.mxu0 0
    %2151 = vmatprep.subr.bf16.mxu0 0
    %2152 = vmatpush1.bf16.msra.mxu0 0
    %2153 = vmatprep.mubr.bf16.mxu0 0
    %2154 = vmatmul.mubr.bf16.gmra.mrb[0].mxu0 %v2072
    %v2155 = vpop.f32.mrb[0].mxu0
    %v2156 = vadd.f32 0.0, %v2155
    %v2157 = vpop.f32.mrb[0].mxu0
    %v2158 = vpop.f32.mrb[0].mxu0
    %v2159 = vadd.f32 0.0, %v2158
    %v2160 = vpop.f32.mrb[0].mxu0
    %2161 = vdwg.mxu0
    %v2162 = vadd.f32 %v1905, %v2156
    %v2163 = vadd.f32 %v1906, %v2159
    %s2164 = scalar_lea.vmem %s18, 1
    %v2165 = vld [vmem:[%s2164] sm:$0x1]
    %v2167 = vlaneseq
    %v2168 = vshrl.u32 %v2167, 7
    %v2169 = vsub.s32 0, %v2168
    %v2170 = vrot.slane %v2165, %v2169
    %v2172 = vadd.f32 %v2162, %v2170
    %v2173 = vadd.f32 %v2163, %v2170
    %v2175 = vrot.slane %v2173, 7
    %v2177 = vsel %vm604, %v2172, %v2175
    %v2178 = vld [vmem:[%s19] sm:$0x1]
    %v2179 = vld [vmem:[%s20] sm:$0x1]
    %vm2180 = vcmask 517120
    %v2181 = vsel %vm2180, %v2177, 0.0
    %2182 = vadd.xlane.f32.xlu0 %v2181
    %v2183 = vpop.xlane.xlu0 %2182
    %v2184 = vmul.f32 %v2183, %v619
    %v2185 = vsub.f32 %v2177, %v2184
    %v2186 = vmul.f32 %v2185, %v2185
    %v2187 = vsel %vm2180, %v2186, 0.0
    %2188 = vadd.xlane.f32.xlu0 %v2187
    %v2189 = vpop.xlane.xlu0 %2188
    %v2190 = vmul.f32 %v2189, %v619
    %v2191 = vadd.f32 %v2190, 1e-05
    %v2192 = vrsqrt.pop %v2191
    %v2193 = vmul.f32 %v2185, %v2192
    %v2195 = vlaneseq
    %v2196 = vshrl.u32 %v2195, 7
    %v2197 = vsub.s32 0, %v2196
    %v2198 = vrot.slane %v2178, %v2197
    %v2200 = vmul.f32 %v2193, %v2198
    %v2202 = vlaneseq
    %v2203 = vshrl.u32 %v2202, 7
    %v2204 = vsub.s32 0, %v2203
    %v2205 = vrot.slane %v2179, %v2204
    %v2207 = vadd.f32 %v2200, %v2205
    %v2208 = vld [vmem:[%s21] sm:$0xf]
    %v2209 = vld [vmem:[%s21 + $0x4] sm:$0xf]
    %v2210 = vld [vmem:[%s21 + $0x8] sm:$0xf]
    %v2211 = vld [vmem:[%s21 + $0xc] sm:$0xf]
    %v2212 = vld [vmem:[%s21 + $0x10] sm:$0xf]
    %v2213 = vld [vmem:[%s21 + $0x14] sm:$0xf]
    %v2214 = vld [vmem:[%s21 + $0x18] sm:$0xf]
    %v2215 = vld [vmem:[%s21 + $0x1c] sm:$0xf]
    %v2216 = vpack.c.bf16 %v2207, %v2207
    %v2225 = vunpack.c.l.b16 %v2208
    %v2226 = vunpack.c.l.b16 %v2209
    %v2227 = vunpack.c.l.b16 %v2210
    %v2228 = vunpack.c.l.b16 %v2211
    %v2229 = vunpack.c.l.b16 %v2212
    %v2230 = vunpack.c.l.b16 %v2213
    %v2231 = vunpack.c.l.b16 %v2214
    %v2232 = vunpack.c.l.b16 %v2215
    %v2233 = vpack.c.b16 %v2226, %v2225
    %v2234 = vpack.c.b16 %v2228, %v2227
    %v2235 = vpack.c.b16 %v2230, %v2229
    %v2236 = vpack.c.b16 %v2232, %v2231
    %v2242 = vsel %vm612, %v2216, 0
    %2244 = vmatprep.subr.bf16.mxu0 0
    %2245 = vmatpush1.bf16.msra.mxu0 %v2233
    %2246 = vmatprep.subr.bf16.mxu0 0
    %2247 = vmatpush1.bf16.msra.mxu0 %v2234
    %2248 = vmatprep.subr.bf16.mxu0 0
    %2249 = vmatpush1.bf16.msra.mxu0 %v2235
    %2250 = vmatprep.subr.bf16.mxu0 0
    %2251 = vmatpush1.bf16.msra.mxu0 %v2236
    %2252 = vmatprep.subr.bf16.mxu0 0
    %2253 = vmatpush1.bf16.msra.mxu0 0
    %2254 = vmatprep.subr.bf16.mxu0 0
    %2255 = vmatpush1.bf16.msra.mxu0 0
    %2256 = vmatprep.subr.bf16.mxu0 0
    %2257 = vmatpush1.bf16.msra.mxu0 0
    %2258 = vmatprep.subr.bf16.mxu0 0
    %2259 = vmatpush1.bf16.msra.mxu0 0
    %2260 = vmatprep.subr.bf16.mxu0 0
    %2261 = vmatpush1.bf16.msra.mxu0 0
    %2262 = vmatprep.subr.bf16.mxu0 0
    %2263 = vmatpush1.bf16.msra.mxu0 0
    %2264 = vmatprep.subr.bf16.mxu0 0
    %2265 = vmatpush1.bf16.msra.mxu0 0
    %2266 = vmatprep.subr.bf16.mxu0 0
    %2267 = vmatpush1.bf16.msra.mxu0 0
    %2268 = vmatprep.subr.bf16.mxu0 0
    %2269 = vmatpush1.bf16.msra.mxu0 0
    %2270 = vmatprep.subr.bf16.mxu0 0
    %2271 = vmatpush1.bf16.msra.mxu0 0
    %2272 = vmatprep.subr.bf16.mxu0 0
    %2273 = vmatpush1.bf16.msra.mxu0 0
    %2274 = vmatprep.subr.bf16.mxu0 0
    %2275 = vmatpush1.bf16.msra.mxu0 0
    %2276 = vmatprep.mubr.bf16.mxu0 0
    %2277 = vmatmul.mubr.bf16.gmra.mrb[0].mxu0 %v2242
    %v2278 = vpop.f32.mrb[0].mxu0
    %v2279 = vadd.f32 0.0, %v2278
    %v2280 = vpop.f32.mrb[0].mxu0
    %v2281 = vpop.f32.mrb[0].mxu0
    %v2282 = vpop.f32.mrb[0].mxu0
    %2283 = vdwg.mxu0
    %vm2284 = vcmask 254976
    %2285 = vst.msk [vmem:[#allocation2] sm:$0x3] %vm2284, %v2279
    // Predicated region
    $region90: #{image_prompter_forward.1} parent=1 // pred_check
      _
    $region91: #{image_prompter_forward.1} parent=1 // pred_check_branch
      %2287 = sbr.rel (0) target = $region93
    $region92: #{image_prompter_forward.1} parent=1 // pred_region
      %s2289 = ssub.s32 32, 32
      %2290 = vsyncadd [#allocation3], %s2289
      %s2292 = sshll.u32 [#allocation2], 4
      %s2293 = int_to_ptr.vmem [resolvable:$true] %s2292
      %2295 = dma.vmem_to_hbm [thread:$0]  %s2293, 32, %s22, [#allocation3]
    $region93: #{image_prompter_forward.1} parent=1 // pred_fallthru
      _
    // Predicated region
    $region94: #{image_prompter_forward.1} parent=1 // pred_check
      _
    $region95: #{image_prompter_forward.1} parent=1 // pred_check_branch
      %2297 = sbr.rel (0) target = $region97
    $region96: #{image_prompter_forward.1} parent=1 // pred_region
      %2298 = dma.done [#allocation3], 32
    $region97: #{image_prompter_forward.1} parent=1 // pred_fallthru
      _
    %2299 = vsyncpa [#allocation3], 1

</llo_original>
